<compile_context>
chip_gen: v7x
topology: tpu7x:2x2x1
jax: 0.10.0
libtpu: 0.0.40
codegen_flags: <defaults>
</compile_context>

<pallas_src>
import jax
import jax.numpy as jnp
from jax import lax
from jax.experimental import pallas as pl
from jax.experimental.pallas import tpu as pltpu


# --------------------------------------------------------------------------
# small helpers
# --------------------------------------------------------------------------
def _for_each_channel(cb, h, body):
    """Run body(row_offset) for each channel in the group.

    Static unroll for small cb; lax.fori_loop (bounded live ranges) otherwise.
    """
    if cb <= 4:
        for cc in range(cb):
            body(cc * h)
    else:
        def loop_body(cc, carry):
            body(pl.multiple_of(cc * h, h))
            return carry
        lax.fori_loop(0, cb, loop_body, 0)


def _dft_mats(n):
    """Ortho-normalized DFT matrix of size n: bf16 (real, imag, real+imag)."""
    idx = jnp.arange(n, dtype=jnp.int32)
    kj = (idx[:, None] * idx[None, :]) % n          # keep angles small
    ang = (-2.0 * jnp.pi / n) * kj.astype(jnp.float32)
    scale = jnp.float32(n) ** -0.5
    re = jnp.cos(ang) * scale
    im = jnp.sin(ang) * scale
    return (re.astype(jnp.bfloat16),
            im.astype(jnp.bfloat16),
            (re + im).astype(jnp.bfloat16))         # sum precomputed in f32


def _vmem_capacity_bytes():
    try:
        info = pltpu.get_tpu_info()
        cap = getattr(info, "vmem_capacity_bytes", None)
        if cap:
            return int(cap)
    except Exception:
        pass
    return 128 * 1024 * 1024                        # conservative default


def _vmem_estimate(cb, h, w, tn, quantized, square):
    """Rough per-grid-step VMEM footprint (bytes), double buffers included."""
    bh = cb * h
    dedup = square and tn == w
    mask_b = 1 if quantized else 2                  # bytes / mask element
    est = 0
    est += 2 * 4 * h * w                            # img block (f32, 2 bufs)
    est += 2 * 2 * mask_b * bh * w                  # two mask planes (2 bufs)
    est += 2 * 3 * 2 * h * h                        # Fh re/im/sum (bf16, 2 bufs)
    if not dedup:
        est += 2 * 3 * 2 * w * tn                   # Fw tiles (bf16, 2 bufs)
    est += 2 * 4 * bh * tn                          # output block (f32, 2 bufs)
    est += 3 * 2 * bh * w                           # xr/xi/xs scratch (bf16)
    est += 2 * 4 * bh * tn                          # sr/si scratch (f32)
    est += 3 * 4 * bh * tn                          # k1/k2/k3 temporaries
    est += 4 * 4 * h * max(w, tn)                   # misc per-channel temps
    return est


def _choose_config(c, h, w, quantized, square, vmem_cap):
    """Pick (channel groups g, channels/step cb, column tile tn, vmem limit)."""
    two_core = vmem_cap <= 80 * (1 << 20)           # v7x-like: 64 MiB/TC, 2 TCs
    vmem_limit = (vmem_cap * 3) // 4                # 48 MiB v7x, 96 MiB v5e/v6e
    budget = int(vmem_limit * 0.70)

    # Column-tile candidates (last dim must be a multiple of 128 or == w).
    tn_cands = [w] + [t for t in (512, 256, 128) if t < w and w % t == 0]

    # Block legality / alignment: block sublane dim cb*h must be 16-aligned
    # (bf16/int8 packing) unless the block covers the whole array (g == 1).
    # If h itself is not 16-aligned, intra-block channel slices may cost a
    # relayout (correct, just slower).
    def block_ok(g):
        cb = c // g
        return g == 1 or (cb * h) % 16 == 0

    gs = [g for g in range(1, c + 1) if c % g == 0 and block_ok(g)]
    min_g = 2 if (two_core and c >= 2) else 1       # engage both v7x cores
    gs_pref = [g for g in gs if g >= min_g] or gs

    for g in gs_pref:                               # smallest g => tallest M
        cb = c // g
        for tn in tn_cands:                         # largest tile first
            if _vmem_estimate(cb, h, w, tn, quantized, square) <= budget:
                return g, cb, tn, int(vmem_limit)

    # Nothing fits the budget: fall back to the smallest expressible footprint
    # (largest g, smallest column tile) and hope the conservative estimate was
    # pessimistic; this replaces the old "single full-array block" failure.
    g = gs_pref[-1]
    return g, c // g, tn_cands[-1], int(vmem_limit)


# --------------------------------------------------------------------------
# kernel
# --------------------------------------------------------------------------
def _make_kernel(cb, h, dedup, img_scale):
    """cb = channels per grid step; dedup = reuse Fh consts for the Fw stage."""

    def kernel(*args):
        img_ref, mre_ref, mim_ref = args[0:3]
        if dedup:
            fhr_ref, fhi_ref, fhs_ref = args[3:6]
            fwr_ref, fwi_ref, fws_ref = fhr_ref, fhi_ref, fhs_ref
            out_ref = args[6]
            xr_s, xi_s, xs_s, sr_s, si_s = args[7:12]
        else:
            fhr_ref, fhi_ref, fhs_ref, fwr_ref, fwi_ref, fws_ref = args[3:9]
            out_ref = args[9]
            xr_s, xi_s, xs_s, sr_s, si_s = args[10:15]

        j = pl.program_id(1)

        # ---- build masked image (once per channel group, reused per tile) --
        @pl.when(j == 0)
        def _build_masked_image():
            img_f = img_ref[...]                        # (h, w) f32
            if img_scale != 1.0:
                img_f = img_f * jnp.float32(img_scale)  # int8-mask dequant scale

            def build_one(row0):
                sl = pl.ds(row0, h)
                m_r = mre_ref[sl, :].astype(jnp.float32)
                m_i = mim_ref[sl, :].astype(jnp.float32)
                xr = img_f * m_r                        # f32 VPU path
                xi = img_f * m_i
                xr_s[sl, :] = xr.astype(jnp.bfloat16)   # bf16 MXU operands
                xi_s[sl, :] = xi.astype(jnp.bfloat16)
                xs_s[sl, :] = (xr + xi).astype(jnp.bfloat16)

            _for_each_channel(cb, h, build_one)

        # ---- stage A: column DFT, one batched matmul over all channels -----
        # Gauss 3-mult: Re = k1 - k2, Im = k3 - k1 - k2.
        fwr = fwr_ref[...]
        fwi = fwi_ref[...]
        fws = fws_ref[...]
        xr = xr_s[...]
        xi = xi_s[...]
        xs = xs_s[...]
        k1 = jnp.dot(xr, fwr, preferred_element_type=jnp.float32)
        k2 = jnp.dot(xi, fwi, preferred_element_type=jnp.float32)
        k3 = jnp.dot(xs, fws, preferred_element_type=jnp.float32)
        sr_s[...] = k1 - k2                             # f32 between stages
        si_s[...] = k3 - k1 - k2

        # ---- stage B: row DFT + magnitude, per channel slice ----------------
        fhr = fhr_ref[...]
        fhi = fhi_ref[...]
        fhs = fhs_ref[...]

        def row_dft_one(row0):
            sl = pl.ds(row0, h)
            s_r = sr_s[sl, :]                           # f32
            s_i = si_s[sl, :]
            a = s_r.astype(jnp.bfloat16)
            b = s_i.astype(jnp.bfloat16)
            ab = (s_r + s_i).astype(jnp.bfloat16)       # sum in f32, cast once
            q1 = jnp.dot(fhr, a, preferred_element_type=jnp.float32)
            q2 = jnp.dot(fhi, b, preferred_element_type=jnp.float32)
            q3 = jnp.dot(fhs, ab, preferred_element_type=jnp.float32)
            yr = q1 - q2
            yi = q3 - q1 - q2
            out_ref[sl, :] = jnp.sqrt(yr * yr + yi * yi)

        _for_each_channel(cb, h, row_dft_one)

    return kernel


# --------------------------------------------------------------------------
# forward-model factory (mirrors the nn.Module: mask fixed at init)
# --------------------------------------------------------------------------
def make_ax_pr_cdp(mask, *, quantize_mask=True):
    """mask: (C,H,W,2) float.  Returns forward(img: (H,W) f32) -> (C,H,W) f32."""
    mask = jnp.asarray(mask, jnp.float32)
    c, h, w, _ = mask.shape

    # --- one-time mask layout prep: planar planes, channels stacked on rows -
    if quantize_mask:
        scale = float(jnp.max(jnp.abs(mask)))
        scale = scale if scale > 0.0 else 1.0
        q = jnp.clip(jnp.round(mask * (127.0 / scale)), -127.0, 127.0)
        q = q.astype(jnp.int8)
        mre = q[..., 0].reshape(c * h, w)               # int8: half the stream
        mim = q[..., 1].reshape(c * h, w)
        img_scale = scale / 127.0                       # folded into the image
    else:
        mre = mask[..., 0].astype(jnp.bfloat16).reshape(c * h, w)
        mim = mask[..., 1].astype(jnp.bfloat16).reshape(c * h, w)
        img_scale = 1.0

    square = (h == w)
    cap = _vmem_capacity_bytes()
    g, cb, tn, vmem_limit = _choose_config(c, h, w, quantize_mask, square, cap)
    dedup = square and (tn == w)                        # reuse Fh for stage A
    J = w // tn

    # --- DFT constants (sums precomputed) ------------------------------------
    fh = _dft_mats(h)
    if dedup:
        f_consts = fh
        f_specs = [pl.BlockSpec((h, h), lambda i, j: (0, 0))] * 3
    else:
        fw = fh if square else _dft_mats(w)
        f_consts = (*fh, *fw)
        f_specs = ([pl.BlockSpec((h, h), lambda i, j: (0, 0))] * 3 +
                   [pl.BlockSpec((w, tn), lambda i, j: (0, j))] * 3)

    kernel = _make_kernel(cb, h, dedup, img_scale)

    grid_spec = pltpu.PrefetchScalarGridSpec(
        num_scalar_prefetch=0,
        grid=(g, J),                                    # (channel groups, col tiles)
        in_specs=[
            pl.BlockSpec((h, w), lambda i, j: (0, 0)),          # img (const)
            pl.BlockSpec((cb * h, w), lambda i, j: (i, 0)),     # mask real
            pl.BlockSpec((cb * h, w), lambda i, j: (i, 0)),     # mask imag
            *f_specs,                                           # DFT matrices
        ],
        out_specs=pl.BlockSpec((cb * h, tn), lambda i, j: (i, j)),
        scratch_shapes=[
            pltpu.VMEM((cb * h, w), jnp.bfloat16),              # xr
            pltpu.VMEM((cb * h, w), jnp.bfloat16),              # xi
            pltpu.VMEM((cb * h, w), jnp.bfloat16),              # xr + xi
            pltpu.VMEM((cb * h, tn), jnp.float32),              # Re(S)
            pltpu.VMEM((cb * h, tn), jnp.float32),              # Im(S)
        ],
    )

    flops = 6 * c * h * w * (h + w)                     # 2 stages x 3 matmuls
    mask_bytes = (2 if quantize_mask else 4) * c * h * w
    const_bytes = sum(int(a.size) * 2 for a in f_consts)
    bytes_accessed = 4 * h * w + mask_bytes + const_bytes + 4 * c * h * w
    cost = pl.CostEstimate(flops=flops, transcendentals=c * h * w,
                           bytes_accessed=int(bytes_accessed))

    call = pl.pallas_call(
        kernel,
        out_shape=jax.ShapeDtypeStruct((c * h, w), jnp.float32),
        grid_spec=grid_spec,
        compiler_params=pltpu.CompilerParams(
            dimension_semantics=("parallel", "arbitrary"),
            vmem_limit_bytes=vmem_limit),
        cost_estimate=cost,
    )

    @jax.jit
    def forward(img):
        img = img.astype(jnp.float32)
        out = call(img, mre, mim, *f_consts)            # (C*H, W)
        return out.reshape(c, h, w)                     # leading-dim split: free

    return forward


def ax_pr_cdp(img, mask):
    """Convenience one-shot API (prefer make_ax_pr_cdp when mask is fixed)."""
    return make_ax_pr_cdp(mask)(img)


# --------------------------------------------------------------------------
if __name__ == "__main__":
    c, h, w = 4, 16, 16
    key = jax.random.PRNGKey(0)
    k_mask, k_img = jax.random.split(key)

    # masktype == 'uniform': ang = 2*pi*rand(c,h,w,1); mask = [cos, sin]
    ang = 2.0 * jnp.pi * jax.random.uniform(k_mask, (c, h, w, 1),
                                            dtype=jnp.float32)
    mask = jnp.concatenate([jnp.cos(ang), jnp.sin(ang)], axis=3)
    img = jax.random.uniform(k_img, (h, w), dtype=jnp.float32)

    forward = make_ax_pr_cdp(mask)
    meas = forward(img)
    jax.block_until_ready(meas)

    # Reference: torch.fft(img_s, 2, normalized=True) followed by magnitude
    # == ortho-normalized fft2 of the complex masked image.
    complex_in = img[None, :, :] * (mask[..., 0] + 1j * mask[..., 1])
    ref = jnp.abs(jnp.fft.fft2(complex_in, norm="ortho"))
    assert meas.shape == (c, h, w)
    assert jnp.allclose(meas, ref, rtol=5e-2, atol=5e-2), \
        float(jnp.max(jnp.abs(meas - ref)))

    print("KERNEL_OK")
</pallas_src>

<mosaic_0001>
module attributes {stable_mosaic.version = 11 : i64} {
  func.func @kernel(%arg0: i32, %arg1: i32, %arg2: memref<16x16xf32, #tpu.memory_space<vmem>>, %arg3: memref<64x16xi8, #tpu.memory_space<vmem>>, %arg4: memref<64x16xi8, #tpu.memory_space<vmem>>, %arg5: memref<16x16xbf16, #tpu.memory_space<vmem>>, %arg6: memref<16x16xbf16, #tpu.memory_space<vmem>>, %arg7: memref<16x16xbf16, #tpu.memory_space<vmem>>, %arg8: memref<64x16xf32, #tpu.memory_space<vmem>>, %arg9: memref<64x16xbf16, #tpu.memory_space<vmem>>, %arg10: memref<64x16xbf16, #tpu.memory_space<vmem>>, %arg11: memref<64x16xbf16, #tpu.memory_space<vmem>>, %arg12: memref<64x16xf32, #tpu.memory_space<vmem>>, %arg13: memref<64x16xf32, #tpu.memory_space<vmem>>) attributes {dimension_semantics = [#tpu.dimension_semantics<parallel>, #tpu.dimension_semantics<arbitrary>], iteration_bounds = array<i64: 1, 1>, scalar_prefetch = 0 : i64, scratch_operands = 5 : i64, tpu.core_type = #tpu.core_type<tc>, window_params = [{pipeline_mode = #tpu.pipeline_mode<synchronous>, transform_indices = @transform_0, window_bounds = array<i64: 16, 16>}, {transform_indices = @transform_1, window_bounds = array<i64: 64, 16>}, {transform_indices = @transform_2, window_bounds = array<i64: 64, 16>}, {pipeline_mode = #tpu.pipeline_mode<synchronous>, transform_indices = @transform_3, window_bounds = array<i64: 16, 16>}, {pipeline_mode = #tpu.pipeline_mode<synchronous>, transform_indices = @transform_4, window_bounds = array<i64: 16, 16>}, {pipeline_mode = #tpu.pipeline_mode<synchronous>, transform_indices = @transform_5, window_bounds = array<i64: 16, 16>}, {transform_indices = @transform_6, window_bounds = array<i64: 64, 16>}]} {
    %c0_i32 = arith.constant 0 : i32
    %0 = arith.cmpi eq, %arg1, %c0_i32 : i32
    %1 = arith.extui %0 : i1 to i32
    %c0_i32_0 = arith.constant 0 : i32
    %2 = arith.cmpi ne, %1, %c0_i32_0 : i32
    scf.if %2 {
      %c0_57 = arith.constant 0 : index
      %c0_58 = arith.constant 0 : index
      %88 = vector.load %arg2[%c0_57, %c0_58] : memref<16x16xf32, #tpu.memory_space<vmem>>, vector<16x16xf32>
      %cst_59 = arith.constant 0.00787400454 : f32
      %89 = vector.broadcast %cst_59 : f32 to vector<16x16xf32>
      %90 = arith.mulf %88, %89 : vector<16x16xf32>
      %c0_60 = arith.constant 0 : index
      %c0_61 = arith.constant 0 : index
      %91 = vector.load %arg3[%c0_60, %c0_61] : memref<64x16xi8, #tpu.memory_space<vmem>>, vector<16x16xi8>
      %92 = arith.sitofp %91 : vector<16x16xi8> to vector<16x16xf32>
      %c0_62 = arith.constant 0 : index
      %c0_63 = arith.constant 0 : index
      %93 = vector.load %arg4[%c0_62, %c0_63] : memref<64x16xi8, #tpu.memory_space<vmem>>, vector<16x16xi8>
      %94 = arith.sitofp %93 : vector<16x16xi8> to vector<16x16xf32>
      %95 = arith.mulf %90, %92 : vector<16x16xf32>
      %96 = arith.mulf %90, %94 : vector<16x16xf32>
      %97 = arith.truncf %95 : vector<16x16xf32> to vector<16x16xbf16>
      %c0_64 = arith.constant 0 : index
      %c0_65 = arith.constant 0 : index
      %98 = vector.load %arg9[%c0_64, %c0_65] : memref<64x16xbf16, #tpu.memory_space<vmem>>, vector<16x16xbf16>
      tpu.vector_store %arg9[%c0_64, %c0_65], %97 {strides = array<i32>} : memref<64x16xbf16, #tpu.memory_space<vmem>>, vector<16x16xbf16>,
      %99 = arith.truncf %96 : vector<16x16xf32> to vector<16x16xbf16>
      %c0_66 = arith.constant 0 : index
      %c0_67 = arith.constant 0 : index
      %100 = vector.load %arg10[%c0_66, %c0_67] : memref<64x16xbf16, #tpu.memory_space<vmem>>, vector<16x16xbf16>
      tpu.vector_store %arg10[%c0_66, %c0_67], %99 {strides = array<i32>} : memref<64x16xbf16, #tpu.memory_space<vmem>>, vector<16x16xbf16>,
      %101 = arith.addf %95, %96 : vector<16x16xf32>
      %102 = arith.truncf %101 : vector<16x16xf32> to vector<16x16xbf16>
      %c0_68 = arith.constant 0 : index
      %c0_69 = arith.constant 0 : index
      %103 = vector.load %arg11[%c0_68, %c0_69] : memref<64x16xbf16, #tpu.memory_space<vmem>>, vector<16x16xbf16>
      tpu.vector_store %arg11[%c0_68, %c0_69], %102 {strides = array<i32>} : memref<64x16xbf16, #tpu.memory_space<vmem>>, vector<16x16xbf16>,
      %c16_70 = arith.constant 16 : index
      %c0_71 = arith.constant 0 : index
      %104 = vector.load %arg3[%c16_70, %c0_71] : memref<64x16xi8, #tpu.memory_space<vmem>>, vector<16x16xi8>
      %105 = arith.sitofp %104 : vector<16x16xi8> to vector<16x16xf32>
      %c16_72 = arith.constant 16 : index
      %c0_73 = arith.constant 0 : index
      %106 = vector.load %arg4[%c16_72, %c0_73] : memref<64x16xi8, #tpu.memory_space<vmem>>, vector<16x16xi8>
      %107 = arith.sitofp %106 : vector<16x16xi8> to vector<16x16xf32>
      %108 = arith.mulf %90, %105 : vector<16x16xf32>
      %109 = arith.mulf %90, %107 : vector<16x16xf32>
      %110 = arith.truncf %108 : vector<16x16xf32> to vector<16x16xbf16>
      %c16_74 = arith.constant 16 : index
      %c0_75 = arith.constant 0 : index
      %111 = vector.load %arg9[%c16_74, %c0_75] : memref<64x16xbf16, #tpu.memory_space<vmem>>, vector<16x16xbf16>
      tpu.vector_store %arg9[%c16_74, %c0_75], %110 {strides = array<i32>} : memref<64x16xbf16, #tpu.memory_space<vmem>>, vector<16x16xbf16>,
      %112 = arith.truncf %109 : vector<16x16xf32> to vector<16x16xbf16>
      %c16_76 = arith.constant 16 : index
      %c0_77 = arith.constant 0 : index
      %113 = vector.load %arg10[%c16_76, %c0_77] : memref<64x16xbf16, #tpu.memory_space<vmem>>, vector<16x16xbf16>
      tpu.vector_store %arg10[%c16_76, %c0_77], %112 {strides = array<i32>} : memref<64x16xbf16, #tpu.memory_space<vmem>>, vector<16x16xbf16>,
      %114 = arith.addf %108, %109 : vector<16x16xf32>
      %115 = arith.truncf %114 : vector<16x16xf32> to vector<16x16xbf16>
      %c16_78 = arith.constant 16 : index
      %c0_79 = arith.constant 0 : index
      %116 = vector.load %arg11[%c16_78, %c0_79] : memref<64x16xbf16, #tpu.memory_space<vmem>>, vector<16x16xbf16>
      tpu.vector_store %arg11[%c16_78, %c0_79], %115 {strides = array<i32>} : memref<64x16xbf16, #tpu.memory_space<vmem>>, vector<16x16xbf16>,
      %c32_80 = arith.constant 32 : index
      %c0_81 = arith.constant 0 : index
      %117 = vector.load %arg3[%c32_80, %c0_81] : memref<64x16xi8, #tpu.memory_space<vmem>>, vector<16x16xi8>
      %118 = arith.sitofp %117 : vector<16x16xi8> to vector<16x16xf32>
      %c32_82 = arith.constant 32 : index
      %c0_83 = arith.constant 0 : index
      %119 = vector.load %arg4[%c32_82, %c0_83] : memref<64x16xi8, #tpu.memory_space<vmem>>, vector<16x16xi8>
      %120 = arith.sitofp %119 : vector<16x16xi8> to vector<16x16xf32>
      %121 = arith.mulf %90, %118 : vector<16x16xf32>
      %122 = arith.mulf %90, %120 : vector<16x16xf32>
      %123 = arith.truncf %121 : vector<16x16xf32> to vector<16x16xbf16>
      %c32_84 = arith.constant 32 : index
      %c0_85 = arith.constant 0 : index
      %124 = vector.load %arg9[%c32_84, %c0_85] : memref<64x16xbf16, #tpu.memory_space<vmem>>, vector<16x16xbf16>
      tpu.vector_store %arg9[%c32_84, %c0_85], %123 {strides = array<i32>} : memref<64x16xbf16, #tpu.memory_space<vmem>>, vector<16x16xbf16>,
      %125 = arith.truncf %122 : vector<16x16xf32> to vector<16x16xbf16>
      %c32_86 = arith.constant 32 : index
      %c0_87 = arith.constant 0 : index
      %126 = vector.load %arg10[%c32_86, %c0_87] : memref<64x16xbf16, #tpu.memory_space<vmem>>, vector<16x16xbf16>
      tpu.vector_store %arg10[%c32_86, %c0_87], %125 {strides = array<i32>} : memref<64x16xbf16, #tpu.memory_space<vmem>>, vector<16x16xbf16>,
      %127 = arith.addf %121, %122 : vector<16x16xf32>
      %128 = arith.truncf %127 : vector<16x16xf32> to vector<16x16xbf16>
      %c32_88 = arith.constant 32 : index
      %c0_89 = arith.constant 0 : index
      %129 = vector.load %arg11[%c32_88, %c0_89] : memref<64x16xbf16, #tpu.memory_space<vmem>>, vector<16x16xbf16>
      tpu.vector_store %arg11[%c32_88, %c0_89], %128 {strides = array<i32>} : memref<64x16xbf16, #tpu.memory_space<vmem>>, vector<16x16xbf16>,
      %c48_90 = arith.constant 48 : index
      %c0_91 = arith.constant 0 : index
      %130 = vector.load %arg3[%c48_90, %c0_91] : memref<64x16xi8, #tpu.memory_space<vmem>>, vector<16x16xi8>
      %131 = arith.sitofp %130 : vector<16x16xi8> to vector<16x16xf32>
      %c48_92 = arith.constant 48 : index
      %c0_93 = arith.constant 0 : index
      %132 = vector.load %arg4[%c48_92, %c0_93] : memref<64x16xi8, #tpu.memory_space<vmem>>, vector<16x16xi8>
      %133 = arith.sitofp %132 : vector<16x16xi8> to vector<16x16xf32>
      %134 = arith.mulf %90, %131 : vector<16x16xf32>
      %135 = arith.mulf %90, %133 : vector<16x16xf32>
      %136 = arith.truncf %134 : vector<16x16xf32> to vector<16x16xbf16>
      %c48_94 = arith.constant 48 : index
      %c0_95 = arith.constant 0 : index
      %137 = vector.load %arg9[%c48_94, %c0_95] : memref<64x16xbf16, #tpu.memory_space<vmem>>, vector<16x16xbf16>
      tpu.vector_store %arg9[%c48_94, %c0_95], %136 {strides = array<i32>} : memref<64x16xbf16, #tpu.memory_space<vmem>>, vector<16x16xbf16>,
      %138 = arith.truncf %135 : vector<16x16xf32> to vector<16x16xbf16>
      %c48_96 = arith.constant 48 : index
      %c0_97 = arith.constant 0 : index
      %139 = vector.load %arg10[%c48_96, %c0_97] : memref<64x16xbf16, #tpu.memory_space<vmem>>, vector<16x16xbf16>
      tpu.vector_store %arg10[%c48_96, %c0_97], %138 {strides = array<i32>} : memref<64x16xbf16, #tpu.memory_space<vmem>>, vector<16x16xbf16>,
      %140 = arith.addf %134, %135 : vector<16x16xf32>
      %141 = arith.truncf %140 : vector<16x16xf32> to vector<16x16xbf16>
      %c48_98 = arith.constant 48 : index
      %c0_99 = arith.constant 0 : index
      %142 = vector.load %arg11[%c48_98, %c0_99] : memref<64x16xbf16, #tpu.memory_space<vmem>>, vector<16x16xbf16>
      tpu.vector_store %arg11[%c48_98, %c0_99], %141 {strides = array<i32>} : memref<64x16xbf16, #tpu.memory_space<vmem>>, vector<16x16xbf16>,
    } else {
    }
    %c0 = arith.constant 0 : index
    %c0_1 = arith.constant 0 : index
    %3 = vector.load %arg5[%c0, %c0_1] : memref<16x16xbf16, #tpu.memory_space<vmem>>, vector<16x16xbf16>
    %c0_2 = arith.constant 0 : index
    %c0_3 = arith.constant 0 : index
    %4 = vector.load %arg6[%c0_2, %c0_3] : memref<16x16xbf16, #tpu.memory_space<vmem>>, vector<16x16xbf16>
    %c0_4 = arith.constant 0 : index
    %c0_5 = arith.constant 0 : index
    %5 = vector.load %arg7[%c0_4, %c0_5] : memref<16x16xbf16, #tpu.memory_space<vmem>>, vector<16x16xbf16>
    %c0_6 = arith.constant 0 : index
    %c0_7 = arith.constant 0 : index
    %6 = vector.load %arg9[%c0_6, %c0_7] : memref<64x16xbf16, #tpu.memory_space<vmem>>, vector<64x16xbf16>
    %c0_8 = arith.constant 0 : index
    %c0_9 = arith.constant 0 : index
    %7 = vector.load %arg10[%c0_8, %c0_9] : memref<64x16xbf16, #tpu.memory_space<vmem>>, vector<64x16xbf16>
    %c0_10 = arith.constant 0 : index
    %c0_11 = arith.constant 0 : index
    %8 = vector.load %arg11[%c0_10, %c0_11] : memref<64x16xbf16, #tpu.memory_space<vmem>>, vector<64x16xbf16>
    %cst = arith.constant dense<0.000000e+00> : vector<64x16xf32>
    %9 = tpu.matmul %6, %3, %cst {dimension_numbers = #tpu.dot_dimension_numbers<[1], [0], [0], [1], [0, 0, 1, 1], [], []>} : vector<64x16xbf16>, vector<16x16xbf16>, vector<64x16xf32> -> vector<64x16xf32>
    %cst_12 = arith.constant dense<0.000000e+00> : vector<64x16xf32>
    %10 = tpu.matmul %7, %4, %cst_12 {dimension_numbers = #tpu.dot_dimension_numbers<[1], [0], [0], [1], [0, 0, 1, 1], [], []>} : vector<64x16xbf16>, vector<16x16xbf16>, vector<64x16xf32> -> vector<64x16xf32>
    %cst_13 = arith.constant dense<0.000000e+00> : vector<64x16xf32>
    %11 = tpu.matmul %8, %5, %cst_13 {dimension_numbers = #tpu.dot_dimension_numbers<[1], [0], [0], [1], [0, 0, 1, 1], [], []>} : vector<64x16xbf16>, vector<16x16xbf16>, vector<64x16xf32> -> vector<64x16xf32>
    %12 = arith.subf %9, %10 : vector<64x16xf32>
    %c0_14 = arith.constant 0 : index
    %c0_15 = arith.constant 0 : index
    %13 = vector.load %arg12[%c0_14, %c0_15] : memref<64x16xf32, #tpu.memory_space<vmem>>, vector<64x16xf32>
    tpu.vector_store %arg12[%c0_14, %c0_15], %12 {strides = array<i32>} : memref<64x16xf32, #tpu.memory_space<vmem>>, vector<64x16xf32>,
    %14 = arith.subf %11, %9 : vector<64x16xf32>
    %15 = arith.subf %14, %10 : vector<64x16xf32>
    %c0_16 = arith.constant 0 : index
    %c0_17 = arith.constant 0 : index
    %16 = vector.load %arg13[%c0_16, %c0_17] : memref<64x16xf32, #tpu.memory_space<vmem>>, vector<64x16xf32>
    tpu.vector_store %arg13[%c0_16, %c0_17], %15 {strides = array<i32>} : memref<64x16xf32, #tpu.memory_space<vmem>>, vector<64x16xf32>,
    %c0_18 = arith.constant 0 : index
    %c0_19 = arith.constant 0 : index
    %17 = vector.load %arg5[%c0_18, %c0_19] : memref<16x16xbf16, #tpu.memory_space<vmem>>, vector<16x16xbf16>
    %c0_20 = arith.constant 0 : index
    %c0_21 = arith.constant 0 : index
    %18 = vector.load %arg6[%c0_20, %c0_21] : memref<16x16xbf16, #tpu.memory_space<vmem>>, vector<16x16xbf16>
    %c0_22 = arith.constant 0 : index
    %c0_23 = arith.constant 0 : index
    %19 = vector.load %arg7[%c0_22, %c0_23] : memref<16x16xbf16, #tpu.memory_space<vmem>>, vector<16x16xbf16>
    %c0_24 = arith.constant 0 : index
    %c0_25 = arith.constant 0 : index
    %20 = vector.load %arg12[%c0_24, %c0_25] : memref<64x16xf32, #tpu.memory_space<vmem>>, vector<16x16xf32>
    %c0_26 = arith.constant 0 : index
    %c0_27 = arith.constant 0 : index
    %21 = vector.load %arg13[%c0_26, %c0_27] : memref<64x16xf32, #tpu.memory_space<vmem>>, vector<16x16xf32>
    %22 = arith.truncf %20 : vector<16x16xf32> to vector<16x16xbf16>
    %23 = arith.truncf %21 : vector<16x16xf32> to vector<16x16xbf16>
    %24 = arith.addf %20, %21 : vector<16x16xf32>
    %25 = arith.truncf %24 : vector<16x16xf32> to vector<16x16xbf16>
    %cst_28 = arith.constant dense<0.000000e+00> : vector<16x16xf32>
    %26 = tpu.matmul %17, %22, %cst_28 {dimension_numbers = #tpu.dot_dimension_numbers<[1], [0], [0], [1], [0, 0, 1, 1], [], []>} : vector<16x16xbf16>, vector<16x16xbf16>, vector<16x16xf32> -> vector<16x16xf32>
    %cst_29 = arith.constant dense<0.000000e+00> : vector<16x16xf32>
    %27 = tpu.matmul %18, %23, %cst_29 {dimension_numbers = #tpu.dot_dimension_numbers<[1], [0], [0], [1], [0, 0, 1, 1], [], []>} : vector<16x16xbf16>, vector<16x16xbf16>, vector<16x16xf32> -> vector<16x16xf32>
    %cst_30 = arith.constant dense<0.000000e+00> : vector<16x16xf32>
    %28 = tpu.matmul %19, %25, %cst_30 {dimension_numbers = #tpu.dot_dimension_numbers<[1], [0], [0], [1], [0, 0, 1, 1], [], []>} : vector<16x16xbf16>, vector<16x16xbf16>, vector<16x16xf32> -> vector<16x16xf32>
    %29 = arith.subf %26, %27 : vector<16x16xf32>
    %30 = arith.subf %28, %26 : vector<16x16xf32>
    %31 = arith.subf %30, %27 : vector<16x16xf32>
    %32 = arith.mulf %29, %29 : vector<16x16xf32>
    %33 = arith.mulf %31, %31 : vector<16x16xf32>
    %34 = arith.addf %32, %33 : vector<16x16xf32>
    %35 = math.sqrt %34 : vector<16x16xf32>
    %c0_31 = arith.constant 0 : index
    %c0_32 = arith.constant 0 : index
    %36 = vector.load %arg8[%c0_31, %c0_32] : memref<64x16xf32, #tpu.memory_space<vmem>>, vector<16x16xf32>
    tpu.vector_store %arg8[%c0_31, %c0_32], %35 {strides = array<i32>} : memref<64x16xf32, #tpu.memory_space<vmem>>, vector<16x16xf32>,
    %c16 = arith.constant 16 : index
    %c0_33 = arith.constant 0 : index
    %37 = vector.load %arg12[%c16, %c0_33] : memref<64x16xf32, #tpu.memory_space<vmem>>, vector<16x16xf32>
    %c16_34 = arith.constant 16 : index
    %c0_35 = arith.constant 0 : index
    %38 = vector.load %arg13[%c16_34, %c0_35] : memref<64x16xf32, #tpu.memory_space<vmem>>, vector<16x16xf32>
    %39 = arith.truncf %37 : vector<16x16xf32> to vector<16x16xbf16>
    %40 = arith.truncf %38 : vector<16x16xf32> to vector<16x16xbf16>
    %41 = arith.addf %37, %38 : vector<16x16xf32>
    %42 = arith.truncf %41 : vector<16x16xf32> to vector<16x16xbf16>
    %cst_36 = arith.constant dense<0.000000e+00> : vector<16x16xf32>
    %43 = tpu.matmul %17, %39, %cst_36 {dimension_numbers = #tpu.dot_dimension_numbers<[1], [0], [0], [1], [0, 0, 1, 1], [], []>} : vector<16x16xbf16>, vector<16x16xbf16>, vector<16x16xf32> -> vector<16x16xf32>
    %cst_37 = arith.constant dense<0.000000e+00> : vector<16x16xf32>
    %44 = tpu.matmul %18, %40, %cst_37 {dimension_numbers = #tpu.dot_dimension_numbers<[1], [0], [0], [1], [0, 0, 1, 1], [], []>} : vector<16x16xbf16>, vector<16x16xbf16>, vector<16x16xf32> -> vector<16x16xf32>
    %cst_38 = arith.constant dense<0.000000e+00> : vector<16x16xf32>
    %45 = tpu.matmul %19, %42, %cst_38 {dimension_numbers = #tpu.dot_dimension_numbers<[1], [0], [0], [1], [0, 0, 1, 1], [], []>} : vector<16x16xbf16>, vector<16x16xbf16>, vector<16x16xf32> -> vector<16x16xf32>
    %46 = arith.subf %43, %44 : vector<16x16xf32>
    %47 = arith.subf %45, %43 : vector<16x16xf32>
    %48 = arith.subf %47, %44 : vector<16x16xf32>
    %49 = arith.mulf %46, %46 : vector<16x16xf32>
    %50 = arith.mulf %48, %48 : vector<16x16xf32>
    %51 = arith.addf %49, %50 : vector<16x16xf32>
    %52 = math.sqrt %51 : vector<16x16xf32>
    %c16_39 = arith.constant 16 : index
    %c0_40 = arith.constant 0 : index
    %53 = vector.load %arg8[%c16_39, %c0_40] : memref<64x16xf32, #tpu.memory_space<vmem>>, vector<16x16xf32>
    tpu.vector_store %arg8[%c16_39, %c0_40], %52 {strides = array<i32>} : memref<64x16xf32, #tpu.memory_space<vmem>>, vector<16x16xf32>,
    %c32 = arith.constant 32 : index
    %c0_41 = arith.constant 0 : index
    %54 = vector.load %arg12[%c32, %c0_41] : memref<64x16xf32, #tpu.memory_space<vmem>>, vector<16x16xf32>
    %c32_42 = arith.constant 32 : index
    %c0_43 = arith.constant 0 : index
    %55 = vector.load %arg13[%c32_42, %c0_43] : memref<64x16xf32, #tpu.memory_space<vmem>>, vector<16x16xf32>
    %56 = arith.truncf %54 : vector<16x16xf32> to vector<16x16xbf16>
    %57 = arith.truncf %55 : vector<16x16xf32> to vector<16x16xbf16>
    %58 = arith.addf %54, %55 : vector<16x16xf32>
    %59 = arith.truncf %58 : vector<16x16xf32> to vector<16x16xbf16>
    %cst_44 = arith.constant dense<0.000000e+00> : vector<16x16xf32>
    %60 = tpu.matmul %17, %56, %cst_44 {dimension_numbers = #tpu.dot_dimension_numbers<[1], [0], [0], [1], [0, 0, 1, 1], [], []>} : vector<16x16xbf16>, vector<16x16xbf16>, vector<16x16xf32> -> vector<16x16xf32>
    %cst_45 = arith.constant dense<0.000000e+00> : vector<16x16xf32>
    %61 = tpu.matmul %18, %57, %cst_45 {dimension_numbers = #tpu.dot_dimension_numbers<[1], [0], [0], [1], [0, 0, 1, 1], [], []>} : vector<16x16xbf16>, vector<16x16xbf16>, vector<16x16xf32> -> vector<16x16xf32>
    %cst_46 = arith.constant dense<0.000000e+00> : vector<16x16xf32>
    %62 = tpu.matmul %19, %59, %cst_46 {dimension_numbers = #tpu.dot_dimension_numbers<[1], [0], [0], [1], [0, 0, 1, 1], [], []>} : vector<16x16xbf16>, vector<16x16xbf16>, vector<16x16xf32> -> vector<16x16xf32>
    %63 = arith.subf %60, %61 : vector<16x16xf32>
    %64 = arith.subf %62, %60 : vector<16x16xf32>
    %65 = arith.subf %64, %61 : vector<16x16xf32>
    %66 = arith.mulf %63, %63 : vector<16x16xf32>
    %67 = arith.mulf %65, %65 : vector<16x16xf32>
    %68 = arith.addf %66, %67 : vector<16x16xf32>
    %69 = math.sqrt %68 : vector<16x16xf32>
    %c32_47 = arith.constant 32 : index
    %c0_48 = arith.constant 0 : index
    %70 = vector.load %arg8[%c32_47, %c0_48] : memref<64x16xf32, #tpu.memory_space<vmem>>, vector<16x16xf32>
    tpu.vector_store %arg8[%c32_47, %c0_48], %69 {strides = array<i32>} : memref<64x16xf32, #tpu.memory_space<vmem>>, vector<16x16xf32>,
    %c48 = arith.constant 48 : index
    %c0_49 = arith.constant 0 : index
    %71 = vector.load %arg12[%c48, %c0_49] : memref<64x16xf32, #tpu.memory_space<vmem>>, vector<16x16xf32>
    %c48_50 = arith.constant 48 : index
    %c0_51 = arith.constant 0 : index
    %72 = vector.load %arg13[%c48_50, %c0_51] : memref<64x16xf32, #tpu.memory_space<vmem>>, vector<16x16xf32>
    %73 = arith.truncf %71 : vector<16x16xf32> to vector<16x16xbf16>
    %74 = arith.truncf %72 : vector<16x16xf32> to vector<16x16xbf16>
    %75 = arith.addf %71, %72 : vector<16x16xf32>
    %76 = arith.truncf %75 : vector<16x16xf32> to vector<16x16xbf16>
    %cst_52 = arith.constant dense<0.000000e+00> : vector<16x16xf32>
    %77 = tpu.matmul %17, %73, %cst_52 {dimension_numbers = #tpu.dot_dimension_numbers<[1], [0], [0], [1], [0, 0, 1, 1], [], []>} : vector<16x16xbf16>, vector<16x16xbf16>, vector<16x16xf32> -> vector<16x16xf32>
    %cst_53 = arith.constant dense<0.000000e+00> : vector<16x16xf32>
    %78 = tpu.matmul %18, %74, %cst_53 {dimension_numbers = #tpu.dot_dimension_numbers<[1], [0], [0], [1], [0, 0, 1, 1], [], []>} : vector<16x16xbf16>, vector<16x16xbf16>, vector<16x16xf32> -> vector<16x16xf32>
    %cst_54 = arith.constant dense<0.000000e+00> : vector<16x16xf32>
    %79 = tpu.matmul %19, %76, %cst_54 {dimension_numbers = #tpu.dot_dimension_numbers<[1], [0], [0], [1], [0, 0, 1, 1], [], []>} : vector<16x16xbf16>, vector<16x16xbf16>, vector<16x16xf32> -> vector<16x16xf32>
    %80 = arith.subf %77, %78 : vector<16x16xf32>
    %81 = arith.subf %79, %77 : vector<16x16xf32>
    %82 = arith.subf %81, %78 : vector<16x16xf32>
    %83 = arith.mulf %80, %80 : vector<16x16xf32>
    %84 = arith.mulf %82, %82 : vector<16x16xf32>
    %85 = arith.addf %83, %84 : vector<16x16xf32>
    %86 = math.sqrt %85 : vector<16x16xf32>
    %c48_55 = arith.constant 48 : index
    %c0_56 = arith.constant 0 : index
    %87 = vector.load %arg8[%c48_55, %c0_56] : memref<64x16xf32, #tpu.memory_space<vmem>>, vector<16x16xf32>
    tpu.vector_store %arg8[%c48_55, %c0_56], %86 {strides = array<i32>} : memref<64x16xf32, #tpu.memory_space<vmem>>, vector<16x16xf32>,
    return
  }
  func.func @transform_0(%arg0: i32, %arg1: i32) -> (i32, i32) {
    %c0_i32 = arith.constant 0 : i32
    %c0_i32_0 = arith.constant 0 : i32
    %c0_i32_1 = arith.constant 0 : i32
    return %c0_i32, %c0_i32_0 : i32, i32
  }
  func.func @transform_1(%arg0: i32, %arg1: i32) -> (i32, i32) {
    %c0_i32 = arith.constant 0 : i32
    %c0_i32_0 = arith.constant 0 : i32
    return %arg0, %c0_i32 : i32, i32
  }
  func.func @transform_2(%arg0: i32, %arg1: i32) -> (i32, i32) {
    %c0_i32 = arith.constant 0 : i32
    %c0_i32_0 = arith.constant 0 : i32
    return %arg0, %c0_i32 : i32, i32
  }
  func.func @transform_3(%arg0: i32, %arg1: i32) -> (i32, i32) {
    %c0_i32 = arith.constant 0 : i32
    %c0_i32_0 = arith.constant 0 : i32
    %c0_i32_1 = arith.constant 0 : i32
    return %c0_i32, %c0_i32_0 : i32, i32
  }
  func.func @transform_4(%arg0: i32, %arg1: i32) -> (i32, i32) {
    %c0_i32 = arith.constant 0 : i32
    %c0_i32_0 = arith.constant 0 : i32
    %c0_i32_1 = arith.constant 0 : i32
    return %c0_i32, %c0_i32_0 : i32, i32
  }
  func.func @transform_5(%arg0: i32, %arg1: i32) -> (i32, i32) {
    %c0_i32 = arith.constant 0 : i32
    %c0_i32_0 = arith.constant 0 : i32
    %c0_i32_1 = arith.constant 0 : i32
    return %c0_i32, %c0_i32_0 : i32, i32
  }
  func.func @transform_6(%arg0: i32, %arg1: i32) -> (i32, i32) {
    %c0_i32 = arith.constant 0 : i32
    return %arg0, %arg1 : i32, i32
  }
}

</mosaic_0001>

<llo_original>
// kernel: forward.1
$region0: #{forward.1}
  #allocation0 [shape = 'u32[]', space=smem, size = 0x4, offset = 0x4, fixed_abs, tag = 'smem constant byte address 0x4 - core index']
  #allocation1 [shape = 'u32[144,128]{1,0:T(1,128)}', space=vmem, size = 0x12000, scoped, tag = 'internal scratch']
  #allocation2 [shape = 'bf16[64,16]{1,0:T(16,128)(2,1)}', space=vmem, size = 0x4000, scoped, tag = 'scratch operand']
  #allocation3 [shape = 'bf16[64,16]{1,0:T(16,128)(2,1)}', space=vmem, size = 0x4000, scoped, tag = 'scratch operand']
  #allocation4 [shape = 'bf16[64,16]{1,0:T(16,128)(2,1)}', space=vmem, size = 0x4000, scoped, tag = 'scratch operand']
  #allocation5 [shape = 'f32[64,16]{1,0:T(8,128)}', space=vmem, size = 0x8000, scoped, tag = 'scratch operand']
  #allocation6 [shape = 'f32[64,16]{1,0:T(8,128)}', space=vmem, size = 0x8000, scoped, tag = 'scratch operand']
  %s0 = inlined_call_operand.hbm [shape: f32[16,16], index: 0, kind: input, shape index: {}]
  %s1 = inlined_call_operand.hbm [shape: s8[64,16], index: 1, kind: input, shape index: {}]
  %s2 = inlined_call_operand.hbm [shape: s8[64,16], index: 2, kind: input, shape index: {}]
  %s3 = inlined_call_operand.hbm [shape: bf16[16,16], index: 3, kind: input, shape index: {}]
  %s4 = inlined_call_operand.hbm [shape: bf16[16,16], index: 4, kind: input, shape index: {}]
  %s5 = inlined_call_operand.hbm [shape: bf16[16,16], index: 5, kind: input, shape index: {}]
  %s6 = inlined_call_operand.hbm [shape: f32[64,16], index: 6, kind: output, shape index: {}]
  %s7 = sld [smem:[#allocation0]]
  $region62: #{forward.1} parent=0
    _
  %s9 = ssub.s32 1, %s7
  %s10 = scalar_select 0, %s9, %s7
  $region1: #{forward.1} parent=0
    #allocation7 [shape = 'u8[8192]{0}', space=vmem, size = 0x2000, scoped, tag = 'input window, operand 0, single buffered']
    #allocation8 [shape = 's32[1]{0}', space=sflag, size = 0x4, scoped, tag = 'scoped memory for forward.1']
    #allocation9 [shape = 's32[1]{0}', space=sflag, size = 0x4, scoped, tag = 'scoped memory for forward.1']
    #allocation10 [shape = 'u8[8192]{0}', space=vmem, size = 0x2000, scoped, tag = 'input window, operand 1, single buffered']
    #allocation11 [shape = 's32[1]{0}', space=sflag, size = 0x4, scoped, tag = 'scoped memory for forward.1']
    #allocation12 [shape = 'u8[8192]{0}', space=vmem, size = 0x2000, scoped, tag = 'input window, operand 2, single buffered']
    #allocation13 [shape = 'u8[4096]{0}', space=vmem, size = 0x1000, scoped, tag = 'input window, operand 3, single buffered']
    #allocation14 [shape = 's32[1]{0}', space=sflag, size = 0x4, scoped, tag = 'scoped memory for forward.1']
    #allocation15 [shape = 'u8[4096]{0}', space=vmem, size = 0x1000, scoped, tag = 'input window, operand 4, single buffered']
    #allocation16 [shape = 'u8[4096]{0}', space=vmem, size = 0x1000, scoped, tag = 'input window, operand 5, single buffered']
    #allocation17 [shape = 's32[1]{0}', space=sflag, size = 0x4, scoped, tag = 'scoped memory for forward.1']
    #allocation18 [shape = 'u8[32768]{0}', space=vmem, size = 0x8000, scoped, tag = 'output window, operand 0, single buffered']
    %11 = vsyncpa [#allocation8], 0
    %12 = vsyncpa [#allocation11], 0
    %13 = vsyncpa [#allocation14], 0
    %14 = vsyncpa [#allocation17], 0
    %15 = vsyncpa [#allocation9], 0
    // Predicated region
    $region2: #{forward.1} parent=1 // pred_check
      _
    $region3: #{forward.1} parent=1 // pred_check_branch
      %17 = sbr.rel (0) target = $region5
    $region4: #{forward.1} parent=1 // pred_region
      %s19 = ssub.s32 256, 256
      %20 = vsyncadd [#allocation8], %s19
      %s21 = sshll.u32 [#allocation7], 4
      %s22 = int_to_ptr.vmem [resolvable:$true] %s21
      %27 = dma.hbm_to_vmem [thread:$0]  %s0, 256, %s22, [#allocation8], 128, 128, 8
    $region5: #{forward.1} parent=1 // pred_fallthru
      _
    // Predicated region
    $region6: #{forward.1} parent=1 // pred_check
      _
    $region7: #{forward.1} parent=1 // pred_check_branch
      %29 = sbr.rel (0) target = $region9
    $region8: #{forward.1} parent=1 // pred_region
      %s31 = ssub.s32 256, 256
      %32 = vsyncadd [#allocation11], %s31
      %s33 = sshll.u32 [#allocation10], 4
      %s34 = int_to_ptr.vmem [resolvable:$true] %s33
      %39 = dma.hbm_to_vmem [thread:$0]  %s1, 256, %s34, [#allocation11], 128, 128, 8
    $region9: #{forward.1} parent=1 // pred_fallthru
      _
    // Predicated region
    $region10: #{forward.1} parent=1 // pred_check
      _
    $region11: #{forward.1} parent=1 // pred_check_branch
      %41 = sbr.rel (0) target = $region13
    $region12: #{forward.1} parent=1 // pred_region
      %s43 = ssub.s32 256, 256
      %44 = vsyncadd [#allocation11], %s43
      %s45 = sshll.u32 [#allocation12], 4
      %s46 = int_to_ptr.vmem [resolvable:$true] %s45
      %51 = dma.hbm_to_vmem [thread:$0]  %s2, 256, %s46, [#allocation11], 128, 128, 8
    $region13: #{forward.1} parent=1 // pred_fallthru
      _
    // Predicated region
    $region14: #{forward.1} parent=1 // pred_check
      _
    $region15: #{forward.1} parent=1 // pred_check_branch
      %53 = sbr.rel (0) target = $region17
    $region16: #{forward.1} parent=1 // pred_region
      %s55 = ssub.s32 128, 128
      %56 = vsyncadd [#allocation14], %s55
      %s57 = sshll.u32 [#allocation13], 4
      %s58 = int_to_ptr.vmem [resolvable:$true] %s57
      %63 = dma.hbm_to_vmem [thread:$0]  %s3, 128, %s58, [#allocation14], 64, 64, 4
    $region17: #{forward.1} parent=1 // pred_fallthru
      _
    // Predicated region
    $region18: #{forward.1} parent=1 // pred_check
      _
    $region19: #{forward.1} parent=1 // pred_check_branch
      %65 = sbr.rel (0) target = $region21
    $region20: #{forward.1} parent=1 // pred_region
      %s67 = ssub.s32 128, 128
      %68 = vsyncadd [#allocation14], %s67
      %s69 = sshll.u32 [#allocation15], 4
      %s70 = int_to_ptr.vmem [resolvable:$true] %s69
      %75 = dma.hbm_to_vmem [thread:$0]  %s4, 128, %s70, [#allocation14], 64, 64, 4
    $region21: #{forward.1} parent=1 // pred_fallthru
      _
    // Predicated region
    $region22: #{forward.1} parent=1 // pred_check
      _
    $region23: #{forward.1} parent=1 // pred_check_branch
      %77 = sbr.rel (0) target = $region25
    $region24: #{forward.1} parent=1 // pred_region
      %s79 = ssub.s32 128, 128
      %80 = vsyncadd [#allocation17], %s79
      %s81 = sshll.u32 [#allocation16], 4
      %s82 = int_to_ptr.vmem [resolvable:$true] %s81
      %87 = dma.hbm_to_vmem [thread:$0]  %s5, 128, %s82, [#allocation17], 64, 64, 4
    $region25: #{forward.1} parent=1 // pred_fallthru
      _
    // Predicated region
    $region26: #{forward.1} parent=1 // pred_check
      _
    $region27: #{forward.1} parent=1 // pred_check_branch
      %89 = sbr.rel (0) target = $region29
    $region28: #{forward.1} parent=1 // pred_region
      %90 = dma.done [#allocation8], 256
    $region29: #{forward.1} parent=1 // pred_fallthru
      _
    // Predicated region
    $region30: #{forward.1} parent=1 // pred_check
      _
    $region31: #{forward.1} parent=1 // pred_check_branch
      %92 = sbr.rel (0) target = $region33
    $region32: #{forward.1} parent=1 // pred_region
      %93 = dma.done [#allocation11], 256
    $region33: #{forward.1} parent=1 // pred_fallthru
      _
    // Predicated region
    $region34: #{forward.1} parent=1 // pred_check
      _
    $region35: #{forward.1} parent=1 // pred_check_branch
      %95 = sbr.rel (0) target = $region37
    $region36: #{forward.1} parent=1 // pred_region
      %96 = dma.done [#allocation11], 256
    $region37: #{forward.1} parent=1 // pred_fallthru
      _
    // Predicated region
    $region38: #{forward.1} parent=1 // pred_check
      _
    $region39: #{forward.1} parent=1 // pred_check_branch
      %98 = sbr.rel (0) target = $region41
    $region40: #{forward.1} parent=1 // pred_region
      %99 = dma.done [#allocation14], 128
    $region41: #{forward.1} parent=1 // pred_fallthru
      _
    // Predicated region
    $region42: #{forward.1} parent=1 // pred_check
      _
    $region43: #{forward.1} parent=1 // pred_check_branch
      %101 = sbr.rel (0) target = $region45
    $region44: #{forward.1} parent=1 // pred_region
      %102 = dma.done [#allocation14], 128
    $region45: #{forward.1} parent=1 // pred_fallthru
      _
    // Predicated region
    $region46: #{forward.1} parent=1 // pred_check
      _
    $region47: #{forward.1} parent=1 // pred_check_branch
      %104 = sbr.rel (0) target = $region49
    $region48: #{forward.1} parent=1 // pred_region
      %105 = dma.done [#allocation17], 128
    $region49: #{forward.1} parent=1 // pred_fallthru
      _
    %p107 = scmp.eq.s32.totalorder 0, 0
    // Predicated region
    $region50: #{forward.1} parent=1 // pred_check
      %p108 = pneg %p107
    $region51: #{forward.1} parent=1 // pred_check_branch
      %110 = sbr.rel (%p108) target = $region53
    $region52: #{forward.1} parent=1 // pred_region
      %v111 = vld [vmem:[#allocation7] sm:$0xff]
      %v112 = vld [vmem:[#allocation7 + $0x8] sm:$0xff]
      %v113 = vmul.f32 %v111, 0.007874005
      %v114 = vmul.f32 %v112, 0.007874005
      %v115 = vld [vmem:[#allocation10] sm:$0xf]
      %v116 = vunpack.c.0.s8 %v115
      %v117 = vunpack.c.1.s8 %v115
      %v118 = vcvt.s32.f32 %v116
      %v119 = vcvt.s32.f32 %v117
      %v120 = vld [vmem:[#allocation12] sm:$0xf]
      %v121 = vunpack.c.0.s8 %v120
      %v122 = vunpack.c.1.s8 %v120
      %v123 = vcvt.s32.f32 %v121
      %v124 = vcvt.s32.f32 %v122
      %v125 = vmul.f32 %v113, %v118
      %v126 = vmul.f32 %v114, %v119
      %v127 = vmul.f32 %v113, %v123
      %v128 = vmul.f32 %v114, %v124
      %v129 = vpack.c.bf16 %v126, %v125
      %vm130 = vcmask 130048
      %131 = vst.msk [vmem:[#allocation2] sm:$0xff] %vm130, %v129
      %v132 = vpack.c.bf16 %v128, %v127
      %133 = vst.msk [vmem:[#allocation3] sm:$0xff] %vm130, %v132
      %v134 = vadd.f32 %v125, %v127
      %v135 = vadd.f32 %v126, %v128
      %v136 = vpack.c.bf16 %v135, %v134
      %137 = vst.msk [vmem:[#allocation4] sm:$0xff] %vm130, %v136
      %v138 = vld [vmem:[#allocation10] sm:$0xf0]
      %v139 = vrot.slane %v138, 4
      %v140 = vunpack.c.0.s8 %v139
      %v141 = vunpack.c.1.s8 %v139
      %v142 = vcvt.s32.f32 %v140
      %v143 = vcvt.s32.f32 %v141
      %v144 = vld [vmem:[#allocation12] sm:$0xf0]
      %v145 = vrot.slane %v144, 4
      %v146 = vunpack.c.0.s8 %v145
      %v147 = vunpack.c.1.s8 %v145
      %v148 = vcvt.s32.f32 %v146
      %v149 = vcvt.s32.f32 %v147
      %v150 = vmul.f32 %v113, %v142
      %v151 = vmul.f32 %v114, %v143
      %v152 = vmul.f32 %v113, %v148
      %v153 = vmul.f32 %v114, %v149
      %v154 = vpack.c.bf16 %v151, %v150
      %155 = vst.msk [vmem:[#allocation2 + $0x8] sm:$0xff] %vm130, %v154
      %v156 = vpack.c.bf16 %v153, %v152
      %157 = vst.msk [vmem:[#allocation3 + $0x8] sm:$0xff] %vm130, %v156
      %v158 = vadd.f32 %v150, %v152
      %v159 = vadd.f32 %v151, %v153
      %v160 = vpack.c.bf16 %v159, %v158
      %161 = vst.msk [vmem:[#allocation4 + $0x8] sm:$0xff] %vm130, %v160
      %v162 = vld [vmem:[#allocation10 + $0x8] sm:$0xf]
      %v163 = vunpack.c.0.s8 %v162
      %v164 = vunpack.c.1.s8 %v162
      %v165 = vcvt.s32.f32 %v163
      %v166 = vcvt.s32.f32 %v164
      %v167 = vld [vmem:[#allocation12 + $0x8] sm:$0xf]
      %v168 = vunpack.c.0.s8 %v167
      %v169 = vunpack.c.1.s8 %v167
      %v170 = vcvt.s32.f32 %v168
      %v171 = vcvt.s32.f32 %v169
      %v172 = vmul.f32 %v113, %v165
      %v173 = vmul.f32 %v114, %v166
      %v174 = vmul.f32 %v113, %v170
      %v175 = vmul.f32 %v114, %v171
      %v176 = vpack.c.bf16 %v173, %v172
      %177 = vst.msk [vmem:[#allocation2 + $0x10] sm:$0xff] %vm130, %v176
      %v178 = vpack.c.bf16 %v175, %v174
      %179 = vst.msk [vmem:[#allocation3 + $0x10] sm:$0xff] %vm130, %v178
      %v180 = vadd.f32 %v172, %v174
      %v181 = vadd.f32 %v173, %v175
      %v182 = vpack.c.bf16 %v181, %v180
      %183 = vst.msk [vmem:[#allocation4 + $0x10] sm:$0xff] %vm130, %v182
      %v184 = vld [vmem:[#allocation10 + $0x8] sm:$0xf0]
      %v185 = vrot.slane %v184, 4
      %v186 = vunpack.c.0.s8 %v185
      %v187 = vunpack.c.1.s8 %v185
      %v188 = vcvt.s32.f32 %v186
      %v189 = vcvt.s32.f32 %v187
      %v190 = vld [vmem:[#allocation12 + $0x8] sm:$0xf0]
      %v191 = vrot.slane %v190, 4
      %v192 = vunpack.c.0.s8 %v191
      %v193 = vunpack.c.1.s8 %v191
      %v194 = vcvt.s32.f32 %v192
      %v195 = vcvt.s32.f32 %v193
      %v196 = vmul.f32 %v113, %v188
      %v197 = vmul.f32 %v114, %v189
      %v198 = vmul.f32 %v113, %v194
      %v199 = vmul.f32 %v114, %v195
      %v200 = vpack.c.bf16 %v197, %v196
      %201 = vst.msk [vmem:[#allocation2 + $0x18] sm:$0xff] %vm130, %v200
      %v202 = vpack.c.bf16 %v199, %v198
      %203 = vst.msk [vmem:[#allocation3 + $0x18] sm:$0xff] %vm130, %v202
      %v204 = vadd.f32 %v196, %v198
      %v205 = vadd.f32 %v197, %v199
      %v206 = vpack.c.bf16 %v205, %v204
      %207 = vst.msk [vmem:[#allocation4 + $0x18] sm:$0xff] %vm130, %v206
    $region53: #{forward.1} parent=1 // pred_fallthru
      _
    %v208 = vld [vmem:[#allocation13] sm:$0xf]
    %v209 = vld [vmem:[#allocation13 + $0x4] sm:$0xf]
    %v210 = vld [vmem:[#allocation15] sm:$0xf]
    %v211 = vld [vmem:[#allocation15 + $0x4] sm:$0xf]
    %v212 = vld [vmem:[#allocation16] sm:$0xf]
    %v213 = vld [vmem:[#allocation16 + $0x4] sm:$0xf]
    %v214 = vld [vmem:[#allocation2] sm:$0xff]
    %v215 = vld [vmem:[#allocation2 + $0x8] sm:$0xff]
    %v216 = vld [vmem:[#allocation2 + $0x10] sm:$0xff]
    %v217 = vld [vmem:[#allocation2 + $0x18] sm:$0xff]
    %v218 = vld [vmem:[#allocation3] sm:$0xff]
    %v219 = vld [vmem:[#allocation3 + $0x8] sm:$0xff]
    %v220 = vld [vmem:[#allocation3 + $0x10] sm:$0xff]
    %v221 = vld [vmem:[#allocation3 + $0x18] sm:$0xff]
    %v222 = vld [vmem:[#allocation4] sm:$0xff]
    %v223 = vld [vmem:[#allocation4 + $0x8] sm:$0xff]
    %v224 = vld [vmem:[#allocation4 + $0x10] sm:$0xff]
    %v225 = vld [vmem:[#allocation4 + $0x18] sm:$0xff]
    %v228 = vunpack.c.l.b16 %v208
    %v229 = vunpack.c.l.b16 %v209
    %v230 = vpack.c.b16 %v229, %v228
    %vm232 = vcmask 130048
    %v234 = vsel %vm232, %v214, 0
    %v237 = vsel %vm232, %v215, 0
    %v240 = vsel %vm232, %v216, 0
    %v243 = vsel %vm232, %v217, 0
    %245 = vmatprep.subr.bf16.mxu0 0
    %246 = vmatpush1.bf16.msra.mxu0 %v230
    %247 = vmatprep.subr.bf16.mxu0 0
    %248 = vmatpush1.bf16.msra.mxu0 0
    %249 = vmatprep.subr.bf16.mxu0 0
    %250 = vmatpush1.bf16.msra.mxu0 0
    %251 = vmatprep.subr.bf16.mxu0 0
    %252 = vmatpush1.bf16.msra.mxu0 0
    %253 = vmatprep.subr.bf16.mxu0 0
    %254 = vmatpush1.bf16.msra.mxu0 0
    %255 = vmatprep.subr.bf16.mxu0 0
    %256 = vmatpush1.bf16.msra.mxu0 0
    %257 = vmatprep.subr.bf16.mxu0 0
    %258 = vmatpush1.bf16.msra.mxu0 0
    %259 = vmatprep.subr.bf16.mxu0 0
    %260 = vmatpush1.bf16.msra.mxu0 0
    %261 = vmatprep.subr.bf16.mxu0 0
    %262 = vmatpush1.bf16.msra.mxu0 0
    %263 = vmatprep.subr.bf16.mxu0 0
    %264 = vmatpush1.bf16.msra.mxu0 0
    %265 = vmatprep.subr.bf16.mxu0 0
    %266 = vmatpush1.bf16.msra.mxu0 0
    %267 = vmatprep.subr.bf16.mxu0 0
    %268 = vmatpush1.bf16.msra.mxu0 0
    %269 = vmatprep.subr.bf16.mxu0 0
    %270 = vmatpush1.bf16.msra.mxu0 0
    %271 = vmatprep.subr.bf16.mxu0 0
    %272 = vmatpush1.bf16.msra.mxu0 0
    %273 = vmatprep.subr.bf16.mxu0 0
    %274 = vmatpush1.bf16.msra.mxu0 0
    %275 = vmatprep.subr.bf16.mxu0 0
    %276 = vmatpush1.bf16.msra.mxu0 0
    %277 = vmatprep.mubr.bf16.mxu0 0
    %278 = vmatmul.mubr.bf16.gmra.mrb[0].mxu0 %v234
    %v279 = vpop.f32.mrb[0].mxu0
    %v280 = vadd.f32 0.0, %v279
    %v281 = vpop.f32.mrb[0].mxu0
    %v282 = vpop.f32.mrb[0].mxu0
    %v283 = vadd.f32 0.0, %v282
    %v284 = vpop.f32.mrb[0].mxu0
    %285 = vmatprep.mubr.bf16.mxu0 0
    %286 = vmatmul.mubr.bf16.gmra.mrb[0].mxu0 %v237
    %v287 = vpop.f32.mrb[0].mxu0
    %v288 = vadd.f32 0.0, %v287
    %v289 = vpop.f32.mrb[0].mxu0
    %v290 = vpop.f32.mrb[0].mxu0
    %v291 = vadd.f32 0.0, %v290
    %v292 = vpop.f32.mrb[0].mxu0
    %293 = vmatprep.mubr.bf16.mxu0 0
    %294 = vmatmul.mubr.bf16.gmra.mrb[0].mxu0 %v240
    %v295 = vpop.f32.mrb[0].mxu0
    %v296 = vadd.f32 0.0, %v295
    %v297 = vpop.f32.mrb[0].mxu0
    %v298 = vpop.f32.mrb[0].mxu0
    %v299 = vadd.f32 0.0, %v298
    %v300 = vpop.f32.mrb[0].mxu0
    %301 = vmatprep.mubr.bf16.mxu0 0
    %302 = vmatmul.mubr.bf16.gmra.mrb[0].mxu0 %v243
    %v303 = vpop.f32.mrb[0].mxu0
    %v304 = vadd.f32 0.0, %v303
    %v305 = vpop.f32.mrb[0].mxu0
    %v306 = vpop.f32.mrb[0].mxu0
    %v307 = vadd.f32 0.0, %v306
    %v308 = vpop.f32.mrb[0].mxu0
    %309 = vdwg.mxu0
    %v312 = vunpack.c.l.b16 %v210
    %v313 = vunpack.c.l.b16 %v211
    %v314 = vpack.c.b16 %v313, %v312
    %v317 = vsel %vm232, %v218, 0
    %v320 = vsel %vm232, %v219, 0
    %v323 = vsel %vm232, %v220, 0
    %v326 = vsel %vm232, %v221, 0
    %328 = vmatprep.subr.bf16.mxu0 0
    %329 = vmatpush1.bf16.msra.mxu0 %v314
    %330 = vmatprep.subr.bf16.mxu0 0
    %331 = vmatpush1.bf16.msra.mxu0 0
    %332 = vmatprep.subr.bf16.mxu0 0
    %333 = vmatpush1.bf16.msra.mxu0 0
    %334 = vmatprep.subr.bf16.mxu0 0
    %335 = vmatpush1.bf16.msra.mxu0 0
    %336 = vmatprep.subr.bf16.mxu0 0
    %337 = vmatpush1.bf16.msra.mxu0 0
    %338 = vmatprep.subr.bf16.mxu0 0
    %339 = vmatpush1.bf16.msra.mxu0 0
    %340 = vmatprep.subr.bf16.mxu0 0
    %341 = vmatpush1.bf16.msra.mxu0 0
    %342 = vmatprep.subr.bf16.mxu0 0
    %343 = vmatpush1.bf16.msra.mxu0 0
    %344 = vmatprep.subr.bf16.mxu0 0
    %345 = vmatpush1.bf16.msra.mxu0 0
    %346 = vmatprep.subr.bf16.mxu0 0
    %347 = vmatpush1.bf16.msra.mxu0 0
    %348 = vmatprep.subr.bf16.mxu0 0
    %349 = vmatpush1.bf16.msra.mxu0 0
    %350 = vmatprep.subr.bf16.mxu0 0
    %351 = vmatpush1.bf16.msra.mxu0 0
    %352 = vmatprep.subr.bf16.mxu0 0
    %353 = vmatpush1.bf16.msra.mxu0 0
    %354 = vmatprep.subr.bf16.mxu0 0
    %355 = vmatpush1.bf16.msra.mxu0 0
    %356 = vmatprep.subr.bf16.mxu0 0
    %357 = vmatpush1.bf16.msra.mxu0 0
    %358 = vmatprep.subr.bf16.mxu0 0
    %359 = vmatpush1.bf16.msra.mxu0 0
    %360 = vmatprep.mubr.bf16.mxu0 0
    %361 = vmatmul.mubr.bf16.gmra.mrb[0].mxu0 %v317
    %v362 = vpop.f32.mrb[0].mxu0
    %v363 = vadd.f32 0.0, %v362
    %v364 = vpop.f32.mrb[0].mxu0
    %v365 = vpop.f32.mrb[0].mxu0
    %v366 = vadd.f32 0.0, %v365
    %v367 = vpop.f32.mrb[0].mxu0
    %368 = vmatprep.mubr.bf16.mxu0 0
    %369 = vmatmul.mubr.bf16.gmra.mrb[0].mxu0 %v320
    %v370 = vpop.f32.mrb[0].mxu0
    %v371 = vadd.f32 0.0, %v370
    %v372 = vpop.f32.mrb[0].mxu0
    %v373 = vpop.f32.mrb[0].mxu0
    %v374 = vadd.f32 0.0, %v373
    %v375 = vpop.f32.mrb[0].mxu0
    %376 = vmatprep.mubr.bf16.mxu0 0
    %377 = vmatmul.mubr.bf16.gmra.mrb[0].mxu0 %v323
    %v378 = vpop.f32.mrb[0].mxu0
    %v379 = vadd.f32 0.0, %v378
    %v380 = vpop.f32.mrb[0].mxu0
    %v381 = vpop.f32.mrb[0].mxu0
    %v382 = vadd.f32 0.0, %v381
    %v383 = vpop.f32.mrb[0].mxu0
    %384 = vmatprep.mubr.bf16.mxu0 0
    %385 = vmatmul.mubr.bf16.gmra.mrb[0].mxu0 %v326
    %v386 = vpop.f32.mrb[0].mxu0
    %v387 = vadd.f32 0.0, %v386
    %v388 = vpop.f32.mrb[0].mxu0
    %v389 = vpop.f32.mrb[0].mxu0
    %v390 = vadd.f32 0.0, %v389
    %v391 = vpop.f32.mrb[0].mxu0
    %392 = vdwg.mxu0
    %v395 = vunpack.c.l.b16 %v212
    %v396 = vunpack.c.l.b16 %v213
    %v397 = vpack.c.b16 %v396, %v395
    %v400 = vsel %vm232, %v222, 0
    %v403 = vsel %vm232, %v223, 0
    %v406 = vsel %vm232, %v224, 0
    %v409 = vsel %vm232, %v225, 0
    %411 = vmatprep.subr.bf16.mxu0 0
    %412 = vmatpush1.bf16.msra.mxu0 %v397
    %413 = vmatprep.subr.bf16.mxu0 0
    %414 = vmatpush1.bf16.msra.mxu0 0
    %415 = vmatprep.subr.bf16.mxu0 0
    %416 = vmatpush1.bf16.msra.mxu0 0
    %417 = vmatprep.subr.bf16.mxu0 0
    %418 = vmatpush1.bf16.msra.mxu0 0
    %419 = vmatprep.subr.bf16.mxu0 0
    %420 = vmatpush1.bf16.msra.mxu0 0
    %421 = vmatprep.subr.bf16.mxu0 0
    %422 = vmatpush1.bf16.msra.mxu0 0
    %423 = vmatprep.subr.bf16.mxu0 0
    %424 = vmatpush1.bf16.msra.mxu0 0
    %425 = vmatprep.subr.bf16.mxu0 0
    %426 = vmatpush1.bf16.msra.mxu0 0
    %427 = vmatprep.subr.bf16.mxu0 0
    %428 = vmatpush1.bf16.msra.mxu0 0
    %429 = vmatprep.subr.bf16.mxu0 0
    %430 = vmatpush1.bf16.msra.mxu0 0
    %431 = vmatprep.subr.bf16.mxu0 0
    %432 = vmatpush1.bf16.msra.mxu0 0
    %433 = vmatprep.subr.bf16.mxu0 0
    %434 = vmatpush1.bf16.msra.mxu0 0
    %435 = vmatprep.subr.bf16.mxu0 0
    %436 = vmatpush1.bf16.msra.mxu0 0
    %437 = vmatprep.subr.bf16.mxu0 0
    %438 = vmatpush1.bf16.msra.mxu0 0
    %439 = vmatprep.subr.bf16.mxu0 0
    %440 = vmatpush1.bf16.msra.mxu0 0
    %441 = vmatprep.subr.bf16.mxu0 0
    %442 = vmatpush1.bf16.msra.mxu0 0
    %443 = vmatprep.mubr.bf16.mxu0 0
    %444 = vmatmul.mubr.bf16.gmra.mrb[0].mxu0 %v400
    %v445 = vpop.f32.mrb[0].mxu0
    %v446 = vadd.f32 0.0, %v445
    %v447 = vpop.f32.mrb[0].mxu0
    %v448 = vpop.f32.mrb[0].mxu0
    %v449 = vadd.f32 0.0, %v448
    %v450 = vpop.f32.mrb[0].mxu0
    %451 = vmatprep.mubr.bf16.mxu0 0
    %452 = vmatmul.mubr.bf16.gmra.mrb[0].mxu0 %v403
    %v453 = vpop.f32.mrb[0].mxu0
    %v454 = vadd.f32 0.0, %v453
    %v455 = vpop.f32.mrb[0].mxu0
    %v456 = vpop.f32.mrb[0].mxu0
    %v457 = vadd.f32 0.0, %v456
    %v458 = vpop.f32.mrb[0].mxu0
    %459 = vmatprep.mubr.bf16.mxu0 0
    %460 = vmatmul.mubr.bf16.gmra.mrb[0].mxu0 %v406
    %v461 = vpop.f32.mrb[0].mxu0
    %v462 = vadd.f32 0.0, %v461
    %v463 = vpop.f32.mrb[0].mxu0
    %v464 = vpop.f32.mrb[0].mxu0
    %v465 = vadd.f32 0.0, %v464
    %v466 = vpop.f32.mrb[0].mxu0
    %467 = vmatprep.mubr.bf16.mxu0 0
    %468 = vmatmul.mubr.bf16.gmra.mrb[0].mxu0 %v409
    %v469 = vpop.f32.mrb[0].mxu0
    %v470 = vadd.f32 0.0, %v469
    %v471 = vpop.f32.mrb[0].mxu0
    %v472 = vpop.f32.mrb[0].mxu0
    %v473 = vadd.f32 0.0, %v472
    %v474 = vpop.f32.mrb[0].mxu0
    %475 = vdwg.mxu0
    %v476 = vsub.f32 %v280, %v363
    %v477 = vsub.f32 %v283, %v366
    %v478 = vsub.f32 %v288, %v371
    %v479 = vsub.f32 %v291, %v374
    %v480 = vsub.f32 %v296, %v379
    %v481 = vsub.f32 %v299, %v382
    %v482 = vsub.f32 %v304, %v387
    %v483 = vsub.f32 %v307, %v390
    %484 = vst.msk [vmem:[#allocation5] sm:$0xff] %vm232, %v476
    %485 = vst.msk [vmem:[#allocation5 + $0x8] sm:$0xff] %vm232, %v477
    %486 = vst.msk [vmem:[#allocation5 + $0x10] sm:$0xff] %vm232, %v478
    %487 = vst.msk [vmem:[#allocation5 + $0x18] sm:$0xff] %vm232, %v479
    %488 = vst.msk [vmem:[#allocation5 + $0x20] sm:$0xff] %vm232, %v480
    %489 = vst.msk [vmem:[#allocation5 + $0x28] sm:$0xff] %vm232, %v481
    %490 = vst.msk [vmem:[#allocation5 + $0x30] sm:$0xff] %vm232, %v482
    %491 = vst.msk [vmem:[#allocation5 + $0x38] sm:$0xff] %vm232, %v483
    %v492 = vsub.f32 %v446, %v280
    %v493 = vsub.f32 %v449, %v283
    %v494 = vsub.f32 %v454, %v288
    %v495 = vsub.f32 %v457, %v291
    %v496 = vsub.f32 %v462, %v296
    %v497 = vsub.f32 %v465, %v299
    %v498 = vsub.f32 %v470, %v304
    %v499 = vsub.f32 %v473, %v307
    %v500 = vsub.f32 %v492, %v363
    %v501 = vsub.f32 %v493, %v366
    %v502 = vsub.f32 %v494, %v371
    %v503 = vsub.f32 %v495, %v374
    %v504 = vsub.f32 %v496, %v379
    %v505 = vsub.f32 %v497, %v382
    %v506 = vsub.f32 %v498, %v387
    %v507 = vsub.f32 %v499, %v390
    %508 = vst.msk [vmem:[#allocation6] sm:$0xff] %vm232, %v500
    %509 = vst.msk [vmem:[#allocation6 + $0x8] sm:$0xff] %vm232, %v501
    %510 = vst.msk [vmem:[#allocation6 + $0x10] sm:$0xff] %vm232, %v502
    %511 = vst.msk [vmem:[#allocation6 + $0x18] sm:$0xff] %vm232, %v503
    %512 = vst.msk [vmem:[#allocation6 + $0x20] sm:$0xff] %vm232, %v504
    %513 = vst.msk [vmem:[#allocation6 + $0x28] sm:$0xff] %vm232, %v505
    %514 = vst.msk [vmem:[#allocation6 + $0x30] sm:$0xff] %vm232, %v506
    %515 = vst.msk [vmem:[#allocation6 + $0x38] sm:$0xff] %vm232, %v507
    %v516 = vld [vmem:[#allocation13] sm:$0xf]
    %v517 = vld [vmem:[#allocation13 + $0x4] sm:$0xf]
    %v518 = vld [vmem:[#allocation15] sm:$0xf]
    %v519 = vld [vmem:[#allocation15 + $0x4] sm:$0xf]
    %v520 = vld [vmem:[#allocation16] sm:$0xf]
    %v521 = vld [vmem:[#allocation16 + $0x4] sm:$0xf]
    %v522 = vld [vmem:[#allocation5] sm:$0xff]
    %v523 = vld [vmem:[#allocation5 + $0x8] sm:$0xff]
    %v524 = vld [vmem:[#allocation6] sm:$0xff]
    %v525 = vld [vmem:[#allocation6 + $0x8] sm:$0xff]
    %v526 = vpack.c.bf16 %v523, %v522
    %v527 = vpack.c.bf16 %v525, %v524
    %v528 = vadd.f32 %v522, %v524
    %v529 = vadd.f32 %v523, %v525
    %v530 = vpack.c.bf16 %v529, %v528
    %v533 = vunpack.c.l.b16 %v516
    %v534 = vunpack.c.l.b16 %v517
    %v535 = vpack.c.b16 %v534, %v533
    %v537 = vsel %vm232, %v535, 0
    %539 = vmatprep.subr.bf16.mxu0 0
    %540 = vmatpush1.bf16.msra.mxu0 %v526
    %541 = vmatprep.subr.bf16.mxu0 0
    %542 = vmatpush1.bf16.msra.mxu0 0
    %543 = vmatprep.subr.bf16.mxu0 0
    %544 = vmatpush1.bf16.msra.mxu0 0
    %545 = vmatprep.subr.bf16.mxu0 0
    %546 = vmatpush1.bf16.msra.mxu0 0
    %547 = vmatprep.subr.bf16.mxu0 0
    %548 = vmatpush1.bf16.msra.mxu0 0
    %549 = vmatprep.subr.bf16.mxu0 0
    %550 = vmatpush1.bf16.msra.mxu0 0
    %551 = vmatprep.subr.bf16.mxu0 0
    %552 = vmatpush1.bf16.msra.mxu0 0
    %553 = vmatprep.subr.bf16.mxu0 0
    %554 = vmatpush1.bf16.msra.mxu0 0
    %555 = vmatprep.subr.bf16.mxu0 0
    %556 = vmatpush1.bf16.msra.mxu0 0
    %557 = vmatprep.subr.bf16.mxu0 0
    %558 = vmatpush1.bf16.msra.mxu0 0
    %559 = vmatprep.subr.bf16.mxu0 0
    %560 = vmatpush1.bf16.msra.mxu0 0
    %561 = vmatprep.subr.bf16.mxu0 0
    %562 = vmatpush1.bf16.msra.mxu0 0
    %563 = vmatprep.subr.bf16.mxu0 0
    %564 = vmatpush1.bf16.msra.mxu0 0
    %565 = vmatprep.subr.bf16.mxu0 0
    %566 = vmatpush1.bf16.msra.mxu0 0
    %567 = vmatprep.subr.bf16.mxu0 0
    %568 = vmatpush1.bf16.msra.mxu0 0
    %569 = vmatprep.subr.bf16.mxu0 0
    %570 = vmatpush1.bf16.msra.mxu0 0
    %571 = vmatprep.mubr.bf16.mxu0 0
    %572 = vmatmul.mubr.bf16.gmra.mrb[0].mxu0 %v537
    %v573 = vpop.f32.mrb[0].mxu0
    %v574 = vadd.f32 0.0, %v573
    %v575 = vpop.f32.mrb[0].mxu0
    %v576 = vpop.f32.mrb[0].mxu0
    %v577 = vadd.f32 0.0, %v576
    %v578 = vpop.f32.mrb[0].mxu0
    %579 = vdwg.mxu0
    %v582 = vunpack.c.l.b16 %v518
    %v583 = vunpack.c.l.b16 %v519
    %v584 = vpack.c.b16 %v583, %v582
    %v586 = vsel %vm232, %v584, 0
    %588 = vmatprep.subr.bf16.mxu0 0
    %589 = vmatpush1.bf16.msra.mxu0 %v527
    %590 = vmatprep.subr.bf16.mxu0 0
    %591 = vmatpush1.bf16.msra.mxu0 0
    %592 = vmatprep.subr.bf16.mxu0 0
    %593 = vmatpush1.bf16.msra.mxu0 0
    %594 = vmatprep.subr.bf16.mxu0 0
    %595 = vmatpush1.bf16.msra.mxu0 0
    %596 = vmatprep.subr.bf16.mxu0 0
    %597 = vmatpush1.bf16.msra.mxu0 0
    %598 = vmatprep.subr.bf16.mxu0 0
    %599 = vmatpush1.bf16.msra.mxu0 0
    %600 = vmatprep.subr.bf16.mxu0 0
    %601 = vmatpush1.bf16.msra.mxu0 0
    %602 = vmatprep.subr.bf16.mxu0 0
    %603 = vmatpush1.bf16.msra.mxu0 0
    %604 = vmatprep.subr.bf16.mxu0 0
    %605 = vmatpush1.bf16.msra.mxu0 0
    %606 = vmatprep.subr.bf16.mxu0 0
    %607 = vmatpush1.bf16.msra.mxu0 0
    %608 = vmatprep.subr.bf16.mxu0 0
    %609 = vmatpush1.bf16.msra.mxu0 0
    %610 = vmatprep.subr.bf16.mxu0 0
    %611 = vmatpush1.bf16.msra.mxu0 0
    %612 = vmatprep.subr.bf16.mxu0 0
    %613 = vmatpush1.bf16.msra.mxu0 0
    %614 = vmatprep.subr.bf16.mxu0 0
    %615 = vmatpush1.bf16.msra.mxu0 0
    %616 = vmatprep.subr.bf16.mxu0 0
    %617 = vmatpush1.bf16.msra.mxu0 0
    %618 = vmatprep.subr.bf16.mxu0 0
    %619 = vmatpush1.bf16.msra.mxu0 0
    %620 = vmatprep.mubr.bf16.mxu0 0
    %621 = vmatmul.mubr.bf16.gmra.mrb[0].mxu0 %v586
    %v622 = vpop.f32.mrb[0].mxu0
    %v623 = vadd.f32 0.0, %v622
    %v624 = vpop.f32.mrb[0].mxu0
    %v625 = vpop.f32.mrb[0].mxu0
    %v626 = vadd.f32 0.0, %v625
    %v627 = vpop.f32.mrb[0].mxu0
    %628 = vdwg.mxu0
    %v631 = vunpack.c.l.b16 %v520
    %v632 = vunpack.c.l.b16 %v521
    %v633 = vpack.c.b16 %v632, %v631
    %v635 = vsel %vm232, %v633, 0
    %637 = vmatprep.subr.bf16.mxu0 0
    %638 = vmatpush1.bf16.msra.mxu0 %v530
    %639 = vmatprep.subr.bf16.mxu0 0
    %640 = vmatpush1.bf16.msra.mxu0 0
    %641 = vmatprep.subr.bf16.mxu0 0
    %642 = vmatpush1.bf16.msra.mxu0 0
    %643 = vmatprep.subr.bf16.mxu0 0
    %644 = vmatpush1.bf16.msra.mxu0 0
    %645 = vmatprep.subr.bf16.mxu0 0
    %646 = vmatpush1.bf16.msra.mxu0 0
    %647 = vmatprep.subr.bf16.mxu0 0
    %648 = vmatpush1.bf16.msra.mxu0 0
    %649 = vmatprep.subr.bf16.mxu0 0
    %650 = vmatpush1.bf16.msra.mxu0 0
    %651 = vmatprep.subr.bf16.mxu0 0
    %652 = vmatpush1.bf16.msra.mxu0 0
    %653 = vmatprep.subr.bf16.mxu0 0
    %654 = vmatpush1.bf16.msra.mxu0 0
    %655 = vmatprep.subr.bf16.mxu0 0
    %656 = vmatpush1.bf16.msra.mxu0 0
    %657 = vmatprep.subr.bf16.mxu0 0
    %658 = vmatpush1.bf16.msra.mxu0 0
    %659 = vmatprep.subr.bf16.mxu0 0
    %660 = vmatpush1.bf16.msra.mxu0 0
    %661 = vmatprep.subr.bf16.mxu0 0
    %662 = vmatpush1.bf16.msra.mxu0 0
    %663 = vmatprep.subr.bf16.mxu0 0
    %664 = vmatpush1.bf16.msra.mxu0 0
    %665 = vmatprep.subr.bf16.mxu0 0
    %666 = vmatpush1.bf16.msra.mxu0 0
    %667 = vmatprep.subr.bf16.mxu0 0
    %668 = vmatpush1.bf16.msra.mxu0 0
    %669 = vmatprep.mubr.bf16.mxu0 0
    %670 = vmatmul.mubr.bf16.gmra.mrb[0].mxu0 %v635
    %v671 = vpop.f32.mrb[0].mxu0
    %v672 = vadd.f32 0.0, %v671
    %v673 = vpop.f32.mrb[0].mxu0
    %v674 = vpop.f32.mrb[0].mxu0
    %v675 = vadd.f32 0.0, %v674
    %v676 = vpop.f32.mrb[0].mxu0
    %677 = vdwg.mxu0
    %v678 = vsub.f32 %v574, %v623
    %v679 = vsub.f32 %v577, %v626
    %v680 = vsub.f32 %v672, %v574
    %v681 = vsub.f32 %v675, %v577
    %v682 = vsub.f32 %v680, %v623
    %v683 = vsub.f32 %v681, %v626
    %v684 = vmul.f32 %v678, %v678
    %v685 = vmul.f32 %v679, %v679
    %v686 = vmul.f32 %v682, %v682
    %v687 = vmul.f32 %v683, %v683
    %v688 = vadd.f32 %v684, %v686
    %v689 = vadd.f32 %v685, %v687
    %v690 = vrsqrt.pop %v688
    %v691 = vmul.f32 %v688, %v690
    %vm692 = vcmp.eq.f32.partialorder %v688, inf
    %v693 = vsel %vm692, %v688, %v691
    %vm694 = vcmp.eq.f32.partialorder %v688, 0.0
    %v695 = vand.u32 %v688, 2147483648
    %v696 = vsel %vm694, %v695, %v693
    %v697 = vrsqrt.pop %v689
    %v698 = vmul.f32 %v689, %v697
    %vm699 = vcmp.eq.f32.partialorder %v689, inf
    %v700 = vsel %vm699, %v689, %v698
    %vm701 = vcmp.eq.f32.partialorder %v689, 0.0
    %v702 = vand.u32 %v689, 2147483648
    %v703 = vsel %vm701, %v702, %v700
    %704 = vst.msk [vmem:[#allocation18] sm:$0xff] %vm232, %v696
    %705 = vst.msk [vmem:[#allocation18 + $0x8] sm:$0xff] %vm232, %v703
    %v706 = vld [vmem:[#allocation5 + $0x10] sm:$0xff]
    %v707 = vld [vmem:[#allocation5 + $0x18] sm:$0xff]
    %v708 = vld [vmem:[#allocation6 + $0x10] sm:$0xff]
    %v709 = vld [vmem:[#allocation6 + $0x18] sm:$0xff]
    %v710 = vpack.c.bf16 %v707, %v706
    %v711 = vpack.c.bf16 %v709, %v708
    %v712 = vadd.f32 %v706, %v708
    %v713 = vadd.f32 %v707, %v709
    %v714 = vpack.c.bf16 %v713, %v712
    %715 = vmatprep.subr.bf16.mxu0 0
    %716 = vmatpush1.bf16.msra.mxu0 %v710
    %717 = vmatprep.subr.bf16.mxu0 0
    %718 = vmatpush1.bf16.msra.mxu0 0
    %719 = vmatprep.subr.bf16.mxu0 0
    %720 = vmatpush1.bf16.msra.mxu0 0
    %721 = vmatprep.subr.bf16.mxu0 0
    %722 = vmatpush1.bf16.msra.mxu0 0
    %723 = vmatprep.subr.bf16.mxu0 0
    %724 = vmatpush1.bf16.msra.mxu0 0
    %725 = vmatprep.subr.bf16.mxu0 0
    %726 = vmatpush1.bf16.msra.mxu0 0
    %727 = vmatprep.subr.bf16.mxu0 0
    %728 = vmatpush1.bf16.msra.mxu0 0
    %729 = vmatprep.subr.bf16.mxu0 0
    %730 = vmatpush1.bf16.msra.mxu0 0
    %731 = vmatprep.subr.bf16.mxu0 0
    %732 = vmatpush1.bf16.msra.mxu0 0
    %733 = vmatprep.subr.bf16.mxu0 0
    %734 = vmatpush1.bf16.msra.mxu0 0
    %735 = vmatprep.subr.bf16.mxu0 0
    %736 = vmatpush1.bf16.msra.mxu0 0
    %737 = vmatprep.subr.bf16.mxu0 0
    %738 = vmatpush1.bf16.msra.mxu0 0
    %739 = vmatprep.subr.bf16.mxu0 0
    %740 = vmatpush1.bf16.msra.mxu0 0
    %741 = vmatprep.subr.bf16.mxu0 0
    %742 = vmatpush1.bf16.msra.mxu0 0
    %743 = vmatprep.subr.bf16.mxu0 0
    %744 = vmatpush1.bf16.msra.mxu0 0
    %745 = vmatprep.subr.bf16.mxu0 0
    %746 = vmatpush1.bf16.msra.mxu0 0
    %747 = vmatprep.mubr.bf16.mxu0 0
    %748 = vmatmul.mubr.bf16.gmra.mrb[0].mxu0 %v537
    %v749 = vpop.f32.mrb[0].mxu0
    %v750 = vadd.f32 0.0, %v749
    %v751 = vpop.f32.mrb[0].mxu0
    %v752 = vpop.f32.mrb[0].mxu0
    %v753 = vadd.f32 0.0, %v752
    %v754 = vpop.f32.mrb[0].mxu0
    %755 = vdwg.mxu0
    %756 = vmatprep.subr.bf16.mxu0 0
    %757 = vmatpush1.bf16.msra.mxu0 %v711
    %758 = vmatprep.subr.bf16.mxu0 0
    %759 = vmatpush1.bf16.msra.mxu0 0
    %760 = vmatprep.subr.bf16.mxu0 0
    %761 = vmatpush1.bf16.msra.mxu0 0
    %762 = vmatprep.subr.bf16.mxu0 0
    %763 = vmatpush1.bf16.msra.mxu0 0
    %764 = vmatprep.subr.bf16.mxu0 0
    %765 = vmatpush1.bf16.msra.mxu0 0
    %766 = vmatprep.subr.bf16.mxu0 0
    %767 = vmatpush1.bf16.msra.mxu0 0
    %768 = vmatprep.subr.bf16.mxu0 0
    %769 = vmatpush1.bf16.msra.mxu0 0
    %770 = vmatprep.subr.bf16.mxu0 0
    %771 = vmatpush1.bf16.msra.mxu0 0
    %772 = vmatprep.subr.bf16.mxu0 0
    %773 = vmatpush1.bf16.msra.mxu0 0
    %774 = vmatprep.subr.bf16.mxu0 0
    %775 = vmatpush1.bf16.msra.mxu0 0
    %776 = vmatprep.subr.bf16.mxu0 0
    %777 = vmatpush1.bf16.msra.mxu0 0
    %778 = vmatprep.subr.bf16.mxu0 0
    %779 = vmatpush1.bf16.msra.mxu0 0
    %780 = vmatprep.subr.bf16.mxu0 0
    %781 = vmatpush1.bf16.msra.mxu0 0
    %782 = vmatprep.subr.bf16.mxu0 0
    %783 = vmatpush1.bf16.msra.mxu0 0
    %784 = vmatprep.subr.bf16.mxu0 0
    %785 = vmatpush1.bf16.msra.mxu0 0
    %786 = vmatprep.subr.bf16.mxu0 0
    %787 = vmatpush1.bf16.msra.mxu0 0
    %788 = vmatprep.mubr.bf16.mxu0 0
    %789 = vmatmul.mubr.bf16.gmra.mrb[0].mxu0 %v586
    %v790 = vpop.f32.mrb[0].mxu0
    %v791 = vadd.f32 0.0, %v790
    %v792 = vpop.f32.mrb[0].mxu0
    %v793 = vpop.f32.mrb[0].mxu0
    %v794 = vadd.f32 0.0, %v793
    %v795 = vpop.f32.mrb[0].mxu0
    %796 = vdwg.mxu0
    %797 = vmatprep.subr.bf16.mxu0 0
    %798 = vmatpush1.bf16.msra.mxu0 %v714
    %799 = vmatprep.subr.bf16.mxu0 0
    %800 = vmatpush1.bf16.msra.mxu0 0
    %801 = vmatprep.subr.bf16.mxu0 0
    %802 = vmatpush1.bf16.msra.mxu0 0
    %803 = vmatprep.subr.bf16.mxu0 0
    %804 = vmatpush1.bf16.msra.mxu0 0
    %805 = vmatprep.subr.bf16.mxu0 0
    %806 = vmatpush1.bf16.msra.mxu0 0
    %807 = vmatprep.subr.bf16.mxu0 0
    %808 = vmatpush1.bf16.msra.mxu0 0
    %809 = vmatprep.subr.bf16.mxu0 0
    %810 = vmatpush1.bf16.msra.mxu0 0
    %811 = vmatprep.subr.bf16.mxu0 0
    %812 = vmatpush1.bf16.msra.mxu0 0
    %813 = vmatprep.subr.bf16.mxu0 0
    %814 = vmatpush1.bf16.msra.mxu0 0
    %815 = vmatprep.subr.bf16.mxu0 0
    %816 = vmatpush1.bf16.msra.mxu0 0
    %817 = vmatprep.subr.bf16.mxu0 0
    %818 = vmatpush1.bf16.msra.mxu0 0
    %819 = vmatprep.subr.bf16.mxu0 0
    %820 = vmatpush1.bf16.msra.mxu0 0
    %821 = vmatprep.subr.bf16.mxu0 0
    %822 = vmatpush1.bf16.msra.mxu0 0
    %823 = vmatprep.subr.bf16.mxu0 0
    %824 = vmatpush1.bf16.msra.mxu0 0
    %825 = vmatprep.subr.bf16.mxu0 0
    %826 = vmatpush1.bf16.msra.mxu0 0
    %827 = vmatprep.subr.bf16.mxu0 0
    %828 = vmatpush1.bf16.msra.mxu0 0
    %829 = vmatprep.mubr.bf16.mxu0 0
    %830 = vmatmul.mubr.bf16.gmra.mrb[0].mxu0 %v635
    %v831 = vpop.f32.mrb[0].mxu0
    %v832 = vadd.f32 0.0, %v831
    %v833 = vpop.f32.mrb[0].mxu0
    %v834 = vpop.f32.mrb[0].mxu0
    %v835 = vadd.f32 0.0, %v834
    %v836 = vpop.f32.mrb[0].mxu0
    %837 = vdwg.mxu0
    %v838 = vsub.f32 %v750, %v791
    %v839 = vsub.f32 %v753, %v794
    %v840 = vsub.f32 %v832, %v750
    %v841 = vsub.f32 %v835, %v753
    %v842 = vsub.f32 %v840, %v791
    %v843 = vsub.f32 %v841, %v794
    %v844 = vmul.f32 %v838, %v838
    %v845 = vmul.f32 %v839, %v839
    %v846 = vmul.f32 %v842, %v842
    %v847 = vmul.f32 %v843, %v843
    %v848 = vadd.f32 %v844, %v846
    %v849 = vadd.f32 %v845, %v847
    %v850 = vrsqrt.pop %v848
    %v851 = vmul.f32 %v848, %v850
    %vm852 = vcmp.eq.f32.partialorder %v848, inf
    %v853 = vsel %vm852, %v848, %v851
    %vm854 = vcmp.eq.f32.partialorder %v848, 0.0
    %v855 = vand.u32 %v848, 2147483648
    %v856 = vsel %vm854, %v855, %v853
    %v857 = vrsqrt.pop %v849
    %v858 = vmul.f32 %v849, %v857
    %vm859 = vcmp.eq.f32.partialorder %v849, inf
    %v860 = vsel %vm859, %v849, %v858
    %vm861 = vcmp.eq.f32.partialorder %v849, 0.0
    %v862 = vand.u32 %v849, 2147483648
    %v863 = vsel %vm861, %v862, %v860
    %864 = vst.msk [vmem:[#allocation18 + $0x10] sm:$0xff] %vm232, %v856
    %865 = vst.msk [vmem:[#allocation18 + $0x18] sm:$0xff] %vm232, %v863
    %v866 = vld [vmem:[#allocation5 + $0x20] sm:$0xff]
    %v867 = vld [vmem:[#allocation5 + $0x28] sm:$0xff]
    %v868 = vld [vmem:[#allocation6 + $0x20] sm:$0xff]
    %v869 = vld [vmem:[#allocation6 + $0x28] sm:$0xff]
    %v870 = vpack.c.bf16 %v867, %v866
    %v871 = vpack.c.bf16 %v869, %v868
    %v872 = vadd.f32 %v866, %v868
    %v873 = vadd.f32 %v867, %v869
    %v874 = vpack.c.bf16 %v873, %v872
    %875 = vmatprep.subr.bf16.mxu0 0
    %876 = vmatpush1.bf16.msra.mxu0 %v870
    %877 = vmatprep.subr.bf16.mxu0 0
    %878 = vmatpush1.bf16.msra.mxu0 0
    %879 = vmatprep.subr.bf16.mxu0 0
    %880 = vmatpush1.bf16.msra.mxu0 0
    %881 = vmatprep.subr.bf16.mxu0 0
    %882 = vmatpush1.bf16.msra.mxu0 0
    %883 = vmatprep.subr.bf16.mxu0 0
    %884 = vmatpush1.bf16.msra.mxu0 0
    %885 = vmatprep.subr.bf16.mxu0 0
    %886 = vmatpush1.bf16.msra.mxu0 0
    %887 = vmatprep.subr.bf16.mxu0 0
    %888 = vmatpush1.bf16.msra.mxu0 0
    %889 = vmatprep.subr.bf16.mxu0 0
    %890 = vmatpush1.bf16.msra.mxu0 0
    %891 = vmatprep.subr.bf16.mxu0 0
    %892 = vmatpush1.bf16.msra.mxu0 0
    %893 = vmatprep.subr.bf16.mxu0 0
    %894 = vmatpush1.bf16.msra.mxu0 0
    %895 = vmatprep.subr.bf16.mxu0 0
    %896 = vmatpush1.bf16.msra.mxu0 0
    %897 = vmatprep.subr.bf16.mxu0 0
    %898 = vmatpush1.bf16.msra.mxu0 0
    %899 = vmatprep.subr.bf16.mxu0 0
    %900 = vmatpush1.bf16.msra.mxu0 0
    %901 = vmatprep.subr.bf16.mxu0 0
    %902 = vmatpush1.bf16.msra.mxu0 0
    %903 = vmatprep.subr.bf16.mxu0 0
    %904 = vmatpush1.bf16.msra.mxu0 0
    %905 = vmatprep.subr.bf16.mxu0 0
    %906 = vmatpush1.bf16.msra.mxu0 0
    %907 = vmatprep.mubr.bf16.mxu0 0
    %908 = vmatmul.mubr.bf16.gmra.mrb[0].mxu0 %v537
    %v909 = vpop.f32.mrb[0].mxu0
    %v910 = vadd.f32 0.0, %v909
    %v911 = vpop.f32.mrb[0].mxu0
    %v912 = vpop.f32.mrb[0].mxu0
    %v913 = vadd.f32 0.0, %v912
    %v914 = vpop.f32.mrb[0].mxu0
    %915 = vdwg.mxu0
    %916 = vmatprep.subr.bf16.mxu0 0
    %917 = vmatpush1.bf16.msra.mxu0 %v871
    %918 = vmatprep.subr.bf16.mxu0 0
    %919 = vmatpush1.bf16.msra.mxu0 0
    %920 = vmatprep.subr.bf16.mxu0 0
    %921 = vmatpush1.bf16.msra.mxu0 0
    %922 = vmatprep.subr.bf16.mxu0 0
    %923 = vmatpush1.bf16.msra.mxu0 0
    %924 = vmatprep.subr.bf16.mxu0 0
    %925 = vmatpush1.bf16.msra.mxu0 0
    %926 = vmatprep.subr.bf16.mxu0 0
    %927 = vmatpush1.bf16.msra.mxu0 0
    %928 = vmatprep.subr.bf16.mxu0 0
    %929 = vmatpush1.bf16.msra.mxu0 0
    %930 = vmatprep.subr.bf16.mxu0 0
    %931 = vmatpush1.bf16.msra.mxu0 0
    %932 = vmatprep.subr.bf16.mxu0 0
    %933 = vmatpush1.bf16.msra.mxu0 0
    %934 = vmatprep.subr.bf16.mxu0 0
    %935 = vmatpush1.bf16.msra.mxu0 0
    %936 = vmatprep.subr.bf16.mxu0 0
    %937 = vmatpush1.bf16.msra.mxu0 0
    %938 = vmatprep.subr.bf16.mxu0 0
    %939 = vmatpush1.bf16.msra.mxu0 0
    %940 = vmatprep.subr.bf16.mxu0 0
    %941 = vmatpush1.bf16.msra.mxu0 0
    %942 = vmatprep.subr.bf16.mxu0 0
    %943 = vmatpush1.bf16.msra.mxu0 0
    %944 = vmatprep.subr.bf16.mxu0 0
    %945 = vmatpush1.bf16.msra.mxu0 0
    %946 = vmatprep.subr.bf16.mxu0 0
    %947 = vmatpush1.bf16.msra.mxu0 0
    %948 = vmatprep.mubr.bf16.mxu0 0
    %949 = vmatmul.mubr.bf16.gmra.mrb[0].mxu0 %v586
    %v950 = vpop.f32.mrb[0].mxu0
    %v951 = vadd.f32 0.0, %v950
    %v952 = vpop.f32.mrb[0].mxu0
    %v953 = vpop.f32.mrb[0].mxu0
    %v954 = vadd.f32 0.0, %v953
    %v955 = vpop.f32.mrb[0].mxu0
    %956 = vdwg.mxu0
    %957 = vmatprep.subr.bf16.mxu0 0
    %958 = vmatpush1.bf16.msra.mxu0 %v874
    %959 = vmatprep.subr.bf16.mxu0 0
    %960 = vmatpush1.bf16.msra.mxu0 0
    %961 = vmatprep.subr.bf16.mxu0 0
    %962 = vmatpush1.bf16.msra.mxu0 0
    %963 = vmatprep.subr.bf16.mxu0 0
    %964 = vmatpush1.bf16.msra.mxu0 0
    %965 = vmatprep.subr.bf16.mxu0 0
    %966 = vmatpush1.bf16.msra.mxu0 0
    %967 = vmatprep.subr.bf16.mxu0 0
    %968 = vmatpush1.bf16.msra.mxu0 0
    %969 = vmatprep.subr.bf16.mxu0 0
    %970 = vmatpush1.bf16.msra.mxu0 0
    %971 = vmatprep.subr.bf16.mxu0 0
    %972 = vmatpush1.bf16.msra.mxu0 0
    %973 = vmatprep.subr.bf16.mxu0 0
    %974 = vmatpush1.bf16.msra.mxu0 0
    %975 = vmatprep.subr.bf16.mxu0 0
    %976 = vmatpush1.bf16.msra.mxu0 0
    %977 = vmatprep.subr.bf16.mxu0 0
    %978 = vmatpush1.bf16.msra.mxu0 0
    %979 = vmatprep.subr.bf16.mxu0 0
    %980 = vmatpush1.bf16.msra.mxu0 0
    %981 = vmatprep.subr.bf16.mxu0 0
    %982 = vmatpush1.bf16.msra.mxu0 0
    %983 = vmatprep.subr.bf16.mxu0 0
    %984 = vmatpush1.bf16.msra.mxu0 0
    %985 = vmatprep.subr.bf16.mxu0 0
    %986 = vmatpush1.bf16.msra.mxu0 0
    %987 = vmatprep.subr.bf16.mxu0 0
    %988 = vmatpush1.bf16.msra.mxu0 0
    %989 = vmatprep.mubr.bf16.mxu0 0
    %990 = vmatmul.mubr.bf16.gmra.mrb[0].mxu0 %v635
    %v991 = vpop.f32.mrb[0].mxu0
    %v992 = vadd.f32 0.0, %v991
    %v993 = vpop.f32.mrb[0].mxu0
    %v994 = vpop.f32.mrb[0].mxu0
    %v995 = vadd.f32 0.0, %v994
    %v996 = vpop.f32.mrb[0].mxu0
    %997 = vdwg.mxu0
    %v998 = vsub.f32 %v910, %v951
    %v999 = vsub.f32 %v913, %v954
    %v1000 = vsub.f32 %v992, %v910
    %v1001 = vsub.f32 %v995, %v913
    %v1002 = vsub.f32 %v1000, %v951
    %v1003 = vsub.f32 %v1001, %v954
    %v1004 = vmul.f32 %v998, %v998
    %v1005 = vmul.f32 %v999, %v999
    %v1006 = vmul.f32 %v1002, %v1002
    %v1007 = vmul.f32 %v1003, %v1003
    %v1008 = vadd.f32 %v1004, %v1006
    %v1009 = vadd.f32 %v1005, %v1007
    %v1010 = vrsqrt.pop %v1008
    %v1011 = vmul.f32 %v1008, %v1010
    %vm1012 = vcmp.eq.f32.partialorder %v1008, inf
    %v1013 = vsel %vm1012, %v1008, %v1011
    %vm1014 = vcmp.eq.f32.partialorder %v1008, 0.0
    %v1015 = vand.u32 %v1008, 2147483648
    %v1016 = vsel %vm1014, %v1015, %v1013
    %v1017 = vrsqrt.pop %v1009
    %v1018 = vmul.f32 %v1009, %v1017
    %vm1019 = vcmp.eq.f32.partialorder %v1009, inf
    %v1020 = vsel %vm1019, %v1009, %v1018
    %vm1021 = vcmp.eq.f32.partialorder %v1009, 0.0
    %v1022 = vand.u32 %v1009, 2147483648
    %v1023 = vsel %vm1021, %v1022, %v1020
    %1024 = vst.msk [vmem:[#allocation18 + $0x20] sm:$0xff] %vm232, %v1016
    %1025 = vst.msk [vmem:[#allocation18 + $0x28] sm:$0xff] %vm232, %v1023
    %v1026 = vld [vmem:[#allocation5 + $0x30] sm:$0xff]
    %v1027 = vld [vmem:[#allocation5 + $0x38] sm:$0xff]
    %v1028 = vld [vmem:[#allocation6 + $0x30] sm:$0xff]
    %v1029 = vld [vmem:[#allocation6 + $0x38] sm:$0xff]
    %v1030 = vpack.c.bf16 %v1027, %v1026
    %v1031 = vpack.c.bf16 %v1029, %v1028
    %v1032 = vadd.f32 %v1026, %v1028
    %v1033 = vadd.f32 %v1027, %v1029
    %v1034 = vpack.c.bf16 %v1033, %v1032
    %1035 = vmatprep.subr.bf16.mxu0 0
    %1036 = vmatpush1.bf16.msra.mxu0 %v1030
    %1037 = vmatprep.subr.bf16.mxu0 0
    %1038 = vmatpush1.bf16.msra.mxu0 0
    %1039 = vmatprep.subr.bf16.mxu0 0
    %1040 = vmatpush1.bf16.msra.mxu0 0
    %1041 = vmatprep.subr.bf16.mxu0 0
    %1042 = vmatpush1.bf16.msra.mxu0 0
    %1043 = vmatprep.subr.bf16.mxu0 0
    %1044 = vmatpush1.bf16.msra.mxu0 0
    %1045 = vmatprep.subr.bf16.mxu0 0
    %1046 = vmatpush1.bf16.msra.mxu0 0
    %1047 = vmatprep.subr.bf16.mxu0 0
    %1048 = vmatpush1.bf16.msra.mxu0 0
    %1049 = vmatprep.subr.bf16.mxu0 0
    %1050 = vmatpush1.bf16.msra.mxu0 0
    %1051 = vmatprep.subr.bf16.mxu0 0
    %1052 = vmatpush1.bf16.msra.mxu0 0
    %1053 = vmatprep.subr.bf16.mxu0 0
    %1054 = vmatpush1.bf16.msra.mxu0 0
    %1055 = vmatprep.subr.bf16.mxu0 0
    %1056 = vmatpush1.bf16.msra.mxu0 0
    %1057 = vmatprep.subr.bf16.mxu0 0
    %1058 = vmatpush1.bf16.msra.mxu0 0
    %1059 = vmatprep.subr.bf16.mxu0 0
    %1060 = vmatpush1.bf16.msra.mxu0 0
    %1061 = vmatprep.subr.bf16.mxu0 0
    %1062 = vmatpush1.bf16.msra.mxu0 0
    %1063 = vmatprep.subr.bf16.mxu0 0
    %1064 = vmatpush1.bf16.msra.mxu0 0
    %1065 = vmatprep.subr.bf16.mxu0 0
    %1066 = vmatpush1.bf16.msra.mxu0 0
    %1067 = vmatprep.mubr.bf16.mxu0 0
    %1068 = vmatmul.mubr.bf16.gmra.mrb[0].mxu0 %v537
    %v1069 = vpop.f32.mrb[0].mxu0
    %v1070 = vadd.f32 0.0, %v1069
    %v1071 = vpop.f32.mrb[0].mxu0
    %v1072 = vpop.f32.mrb[0].mxu0
    %v1073 = vadd.f32 0.0, %v1072
    %v1074 = vpop.f32.mrb[0].mxu0
    %1075 = vdwg.mxu0
    %1076 = vmatprep.subr.bf16.mxu0 0
    %1077 = vmatpush1.bf16.msra.mxu0 %v1031
    %1078 = vmatprep.subr.bf16.mxu0 0
    %1079 = vmatpush1.bf16.msra.mxu0 0
    %1080 = vmatprep.subr.bf16.mxu0 0
    %1081 = vmatpush1.bf16.msra.mxu0 0
    %1082 = vmatprep.subr.bf16.mxu0 0
    %1083 = vmatpush1.bf16.msra.mxu0 0
    %1084 = vmatprep.subr.bf16.mxu0 0
    %1085 = vmatpush1.bf16.msra.mxu0 0
    %1086 = vmatprep.subr.bf16.mxu0 0
    %1087 = vmatpush1.bf16.msra.mxu0 0
    %1088 = vmatprep.subr.bf16.mxu0 0
    %1089 = vmatpush1.bf16.msra.mxu0 0
    %1090 = vmatprep.subr.bf16.mxu0 0
    %1091 = vmatpush1.bf16.msra.mxu0 0
    %1092 = vmatprep.subr.bf16.mxu0 0
    %1093 = vmatpush1.bf16.msra.mxu0 0
    %1094 = vmatprep.subr.bf16.mxu0 0
    %1095 = vmatpush1.bf16.msra.mxu0 0
    %1096 = vmatprep.subr.bf16.mxu0 0
    %1097 = vmatpush1.bf16.msra.mxu0 0
    %1098 = vmatprep.subr.bf16.mxu0 0
    %1099 = vmatpush1.bf16.msra.mxu0 0
    %1100 = vmatprep.subr.bf16.mxu0 0
    %1101 = vmatpush1.bf16.msra.mxu0 0
    %1102 = vmatprep.subr.bf16.mxu0 0
    %1103 = vmatpush1.bf16.msra.mxu0 0
    %1104 = vmatprep.subr.bf16.mxu0 0
    %1105 = vmatpush1.bf16.msra.mxu0 0
    %1106 = vmatprep.subr.bf16.mxu0 0
    %1107 = vmatpush1.bf16.msra.mxu0 0
    %1108 = vmatprep.mubr.bf16.mxu0 0
    %1109 = vmatmul.mubr.bf16.gmra.mrb[0].mxu0 %v586
    %v1110 = vpop.f32.mrb[0].mxu0
    %v1111 = vadd.f32 0.0, %v1110
    %v1112 = vpop.f32.mrb[0].mxu0
    %v1113 = vpop.f32.mrb[0].mxu0
    %v1114 = vadd.f32 0.0, %v1113
    %v1115 = vpop.f32.mrb[0].mxu0
    %1116 = vdwg.mxu0
    %1117 = vmatprep.subr.bf16.mxu0 0
    %1118 = vmatpush1.bf16.msra.mxu0 %v1034
    %1119 = vmatprep.subr.bf16.mxu0 0
    %1120 = vmatpush1.bf16.msra.mxu0 0
    %1121 = vmatprep.subr.bf16.mxu0 0
    %1122 = vmatpush1.bf16.msra.mxu0 0
    %1123 = vmatprep.subr.bf16.mxu0 0
    %1124 = vmatpush1.bf16.msra.mxu0 0
    %1125 = vmatprep.subr.bf16.mxu0 0
    %1126 = vmatpush1.bf16.msra.mxu0 0
    %1127 = vmatprep.subr.bf16.mxu0 0
    %1128 = vmatpush1.bf16.msra.mxu0 0
    %1129 = vmatprep.subr.bf16.mxu0 0
    %1130 = vmatpush1.bf16.msra.mxu0 0
    %1131 = vmatprep.subr.bf16.mxu0 0
    %1132 = vmatpush1.bf16.msra.mxu0 0
    %1133 = vmatprep.subr.bf16.mxu0 0
    %1134 = vmatpush1.bf16.msra.mxu0 0
    %1135 = vmatprep.subr.bf16.mxu0 0
    %1136 = vmatpush1.bf16.msra.mxu0 0
    %1137 = vmatprep.subr.bf16.mxu0 0
    %1138 = vmatpush1.bf16.msra.mxu0 0
    %1139 = vmatprep.subr.bf16.mxu0 0
    %1140 = vmatpush1.bf16.msra.mxu0 0
    %1141 = vmatprep.subr.bf16.mxu0 0
    %1142 = vmatpush1.bf16.msra.mxu0 0
    %1143 = vmatprep.subr.bf16.mxu0 0
    %1144 = vmatpush1.bf16.msra.mxu0 0
    %1145 = vmatprep.subr.bf16.mxu0 0
    %1146 = vmatpush1.bf16.msra.mxu0 0
    %1147 = vmatprep.subr.bf16.mxu0 0
    %1148 = vmatpush1.bf16.msra.mxu0 0
    %1149 = vmatprep.mubr.bf16.mxu0 0
    %1150 = vmatmul.mubr.bf16.gmra.mrb[0].mxu0 %v635
    %v1151 = vpop.f32.mrb[0].mxu0
    %v1152 = vadd.f32 0.0, %v1151
    %v1153 = vpop.f32.mrb[0].mxu0
    %v1154 = vpop.f32.mrb[0].mxu0
    %v1155 = vadd.f32 0.0, %v1154
    %v1156 = vpop.f32.mrb[0].mxu0
    %1157 = vdwg.mxu0
    %v1158 = vsub.f32 %v1070, %v1111
    %v1159 = vsub.f32 %v1073, %v1114
    %v1160 = vsub.f32 %v1152, %v1070
    %v1161 = vsub.f32 %v1155, %v1073
    %v1162 = vsub.f32 %v1160, %v1111
    %v1163 = vsub.f32 %v1161, %v1114
    %v1164 = vmul.f32 %v1158, %v1158
    %v1165 = vmul.f32 %v1159, %v1159
    %v1166 = vmul.f32 %v1162, %v1162
    %v1167 = vmul.f32 %v1163, %v1163
    %v1168 = vadd.f32 %v1164, %v1166
    %v1169 = vadd.f32 %v1165, %v1167
    %v1170 = vrsqrt.pop %v1168
    %v1171 = vmul.f32 %v1168, %v1170
    %vm1172 = vcmp.eq.f32.partialorder %v1168, inf
    %v1173 = vsel %vm1172, %v1168, %v1171
    %vm1174 = vcmp.eq.f32.partialorder %v1168, 0.0
    %v1175 = vand.u32 %v1168, 2147483648
    %v1176 = vsel %vm1174, %v1175, %v1173
    %v1177 = vrsqrt.pop %v1169
    %v1178 = vmul.f32 %v1169, %v1177
    %vm1179 = vcmp.eq.f32.partialorder %v1169, inf
    %v1180 = vsel %vm1179, %v1169, %v1178
    %vm1181 = vcmp.eq.f32.partialorder %v1169, 0.0
    %v1182 = vand.u32 %v1169, 2147483648
    %v1183 = vsel %vm1181, %v1182, %v1180
    %1184 = vst.msk [vmem:[#allocation18 + $0x30] sm:$0xff] %vm232, %v1176
    %1185 = vst.msk [vmem:[#allocation18 + $0x38] sm:$0xff] %vm232, %v1183
    // Predicated region
    $region54: #{forward.1} parent=1 // pred_check
      _
    $region55: #{forward.1} parent=1 // pred_check_branch
      %1187 = sbr.rel (0) target = $region57
    $region56: #{forward.1} parent=1 // pred_region
      %s1189 = ssub.s32 1024, 1024
      %1190 = vsyncadd [#allocation9], %s1189
      %s1191 = sshll.u32 [#allocation18], 4
      %s1192 = int_to_ptr.vmem [resolvable:$true] %s1191
      %1197 = dma.vmem_to_hbm [thread:$0]  %s1192, 1024, %s6, [#allocation9], 128, 128, 8
    $region57: #{forward.1} parent=1 // pred_fallthru
      _
    // Predicated region
    $region58: #{forward.1} parent=1 // pred_check
      _
    $region59: #{forward.1} parent=1 // pred_check_branch
      %1199 = sbr.rel (0) target = $region61
    $region60: #{forward.1} parent=1 // pred_region
      %1200 = dma.done [#allocation9], 1024
    $region61: #{forward.1} parent=1 // pred_fallthru
      _
    %1201 = vsyncpa [#allocation8], 1
    %1202 = vsyncpa [#allocation11], 1
    %1203 = vsyncpa [#allocation14], 1
    %1204 = vsyncpa [#allocation17], 1
    %1205 = vsyncpa [#allocation9], 1

</llo_original>
